<compile_context>
chip_gen: v7x
topology: tpu7x:2x2x1
jax: 0.10.0
libtpu: 0.0.40
codegen_flags: <defaults>
</compile_context>

<pallas_src>
import functools

import jax
import jax.numpy as jnp
from jax.experimental import pallas as pl

# ---------------- small synthetic BERT config ----------------
VOCAB = 100
MAX_POS = 16
TYPE_VOCAB = 2
HIDDEN = 32
HEADS = 2
HEAD_DIM = HIDDEN // HEADS
LAYERS = 2
INTER = 64
LN_EPS = 1e-12            # BERT LayerNorm eps
OUT_LANES = 128           # lane-dense padded width of the kernel's output slab
WIN_LANES = 384           # per-slot lane width of the packed H-row weight stack
VEC_ROWS = 2 + 8 * LAYERS + 2
NEG_BIG = -1e9            # cross-batch isolation in the block-diagonal mask

# Explicit matmul precision: DEFAULT multiplies in bf16 on the MXU with f32
# accumulation (parity with the torch f32 reference is ~1e-3). HIGHEST would
# triple the serialized vmatmul count, which is the wrong trade at these shapes.
_PREC = jax.lax.Precision.DEFAULT


# ---------------- in-kernel helpers ----------------
def _erf(x):
    # Abramowitz & Stegun 7.1.26 (|err| <= 1.5e-7); exp/abs only.
    a1, a2, a3, a4, a5 = 0.254829592, -0.284496736, 1.421413741, -1.453152027, 1.061405429
    p = 0.3275911
    sgn = jnp.where(x < 0.0, -1.0, 1.0)
    ax = jnp.abs(x)
    t = 1.0 / (1.0 + p * ax)
    poly = ((((a5 * t + a4) * t + a3) * t + a2) * t + a1) * t
    return sgn * (1.0 - poly * jnp.exp(-ax * ax))


def _gelu_exact(x):
    return 0.5 * x * (1.0 + _erf(x * 0.7071067811865475))


def _layernorm(x, g, b):
    mean = jnp.mean(x, axis=-1, keepdims=True)
    var = jnp.mean((x - mean) * (x - mean), axis=-1, keepdims=True)
    return (x - mean) * jax.lax.rsqrt(var + LN_EPS) * g + b


# ---------------- single fused Pallas kernel (whole forward) ----------------
def _fused_forward_kernel(emb_ref, mask_ref, w_in_ref, w_out_ref, vec_ref, out_ref,
                          *, NH, D, num_layers, inter):
    H = NH * D
    H3 = 3 * H

    def vrow(r, w):                         # one packed bias / LN vector row
        return vec_ref[r, 0:w]

    mask = mask_ref[...]                    # (BS, BS) block-diag + HF padding mask

    # Embedding LayerNorm; activations stay in vregs for the whole forward pass.
    x = _layernorm(emb_ref[...], vrow(0, H), vrow(1, H))

    for l in range(num_layers):             # statically unrolled
        base = 2 + 8 * l
        # lane-tile-aligned chunks of the packed per-layer weight slot
        qkv_w = w_in_ref[l, :, 0:H3]                    # (H, 3H)   Q cols pre-scaled
        ao_w = w_in_ref[l, :, 128:128 + H]              # (H, H)
        i_w = w_in_ref[l, :, 256:256 + inter]           # (H, INTER)
        o_w = w_out_ref[l]                              # (INTER, H)

        # ---- self-attention: one fused QKV matmul, then per-head full-batch attn ----
        qkv = jnp.dot(x, qkv_w, preferred_element_type=jnp.float32,
                      precision=_PREC) + vrow(base + 0, H3)          # (BS, 3H)

        ctx_heads = []
        for h in range(NH):                  # statically unrolled (NH=2)
            c0 = h * D
            q = qkv[:, c0:c0 + D]
            k = qkv[:, H + c0:H + c0 + D]
            v = qkv[:, 2 * H + c0:2 * H + c0 + D]
            # scores over ALL B*S keys; block-diagonal mask isolates batches
            s = jnp.einsum("qd,kd->qk", q, k, preferred_element_type=jnp.float32,
                           precision=_PREC) + mask                   # (BS, BS)
            s = s - jnp.max(s, axis=-1, keepdims=True)
            p = jnp.exp(s)
            p = p * pl.reciprocal(jnp.sum(p, axis=-1, keepdims=True), approx=False)
            ctx_heads.append(jnp.dot(p, v, preferred_element_type=jnp.float32,
                                     precision=_PREC))               # (BS, D)
        ctx = jnp.concatenate(ctx_heads, axis=-1)                    # (BS, H)

        attn = jnp.dot(ctx, ao_w, preferred_element_type=jnp.float32,
                       precision=_PREC) + vrow(base + 1, H)
        x = _layernorm(x + attn, vrow(base + 2, H), vrow(base + 3, H))

        # ---- feed-forward (exact erf GELU) + fused residual + LayerNorm ----
        h_act = _gelu_exact(jnp.dot(x, i_w, preferred_element_type=jnp.float32,
                                    precision=_PREC) + vrow(base + 4, inter))
        ffn = jnp.dot(h_act, o_w, preferred_element_type=jnp.float32,
                      precision=_PREC) + vrow(base + 5, H)
        x = _layernorm(x + ffn, vrow(base + 6, H), vrow(base + 7, H))

    # ---- pooler tanh + decoder sigmoid, applied to all rows (CLS rows picked in JAX) ----
    tail = 2 + 8 * num_layers
    pool_w = w_in_ref[num_layers, :, 0:H]                            # (H, H)
    dec_w = w_in_ref[num_layers, :, 128:128 + OUT_LANES]             # (H, 128) lane-dense
    pooled = jnp.tanh(jnp.dot(x, pool_w, preferred_element_type=jnp.float32,
                              precision=_PREC) + vrow(tail, H))
    logits = jnp.dot(pooled, dec_w, preferred_element_type=jnp.float32,
                     precision=_PREC) + vec_ref[tail + 1, :]
    out_ref[...] = jax.nn.sigmoid(logits)                            # (BS, 128), unmasked store


# ---------------- parameters ----------------
def init_params(key):
    def nrm(k, shape):
        return 0.02 * jax.random.normal(k, shape, jnp.float32)

    keys = iter(jax.random.split(key, 64))
    params = {
        "word_emb": nrm(next(keys), (VOCAB, HIDDEN)),
        "pos_emb": nrm(next(keys), (MAX_POS, HIDDEN)),
        "type_emb": nrm(next(keys), (TYPE_VOCAB, HIDDEN)),
        "emb_ln_g": jnp.ones((HIDDEN,), jnp.float32),
        "emb_ln_b": jnp.zeros((HIDDEN,), jnp.float32),
        "pool_w": nrm(next(keys), (HIDDEN, HIDDEN)),
        "pool_b": jnp.zeros((HIDDEN,), jnp.float32),
        "dec_w": nrm(next(keys), (HIDDEN, 1)),       # nn.Linear(hidden_size, 1)
        "dec_b": jnp.zeros((1,), jnp.float32),
        "layers": [],
    }
    for _ in range(LAYERS):
        lp = {
            "q_w": nrm(next(keys), (HIDDEN, HIDDEN)), "q_b": jnp.zeros((HIDDEN,), jnp.float32),
            "k_w": nrm(next(keys), (HIDDEN, HIDDEN)), "k_b": jnp.zeros((HIDDEN,), jnp.float32),
            "v_w": nrm(next(keys), (HIDDEN, HIDDEN)), "v_b": jnp.zeros((HIDDEN,), jnp.float32),
            "ao_w": nrm(next(keys), (HIDDEN, HIDDEN)), "ao_b": jnp.zeros((HIDDEN,), jnp.float32),
            "attn_ln_g": jnp.ones((HIDDEN,), jnp.float32),
            "attn_ln_b": jnp.zeros((HIDDEN,), jnp.float32),
            "i_w": nrm(next(keys), (HIDDEN, INTER)), "i_b": jnp.zeros((INTER,), jnp.float32),
            "o_w": nrm(next(keys), (INTER, HIDDEN)), "o_b": jnp.zeros((HIDDEN,), jnp.float32),
            "out_ln_g": jnp.ones((HIDDEN,), jnp.float32),
            "out_ln_b": jnp.zeros((HIDDEN,), jnp.float32),
        }
        params["layers"].append(lp)
    return params


def pack_params(params):
    """One-time packing (NOT in the per-call jit path).

    Produces:
      w_in  : (LAYERS+1, HIDDEN, 384)  per-layer [qkv_w | ao_w | i_w] at lane offsets
              0 / 128 / 256 (lane-tile aligned); slot LAYERS holds [pool_w | dec_w(pad 128)].
              The 1/sqrt(head_dim) attention scale is folded into the Q columns.
      w_out : (LAYERS, INTER, HIDDEN)  FFN output weights.
      vecs  : (VEC_ROWS, 128)          every bias / LayerNorm vector, one per row.
    """
    H, I, L = HIDDEN, INTER, LAYERS
    scale = 1.0 / float(HEAD_DIM) ** 0.5

    slots = []
    for lp in params["layers"]:
        slot = jnp.zeros((H, WIN_LANES), jnp.float32)
        qkv_w = jnp.concatenate([lp["q_w"] * scale, lp["k_w"], lp["v_w"]], axis=1)
        slot = slot.at[:, 0:3 * H].set(qkv_w)
        slot = slot.at[:, 128:128 + H].set(lp["ao_w"])
        slot = slot.at[:, 256:256 + I].set(lp["i_w"])
        slots.append(slot)
    head_slot = jnp.zeros((H, WIN_LANES), jnp.float32)
    head_slot = head_slot.at[:, 0:H].set(params["pool_w"])
    head_slot = head_slot.at[:, 128:129].set(params["dec_w"])       # decoder col at lane 128
    slots.append(head_slot)
    w_in = jnp.stack(slots)                                          # (L+1, H, 384)

    w_out = jnp.stack([lp["o_w"] for lp in params["layers"]])        # (L, INTER, H)

    vecs = jnp.zeros((VEC_ROWS, 128), jnp.float32)
    vecs = vecs.at[0, :H].set(params["emb_ln_g"])
    vecs = vecs.at[1, :H].set(params["emb_ln_b"])
    for l, lp in enumerate(params["layers"]):
        base = 2 + 8 * l
        qkv_b = jnp.concatenate([lp["q_b"] * scale, lp["k_b"], lp["v_b"]])
        vecs = vecs.at[base + 0, :3 * H].set(qkv_b)
        vecs = vecs.at[base + 1, :H].set(lp["ao_b"])
        vecs = vecs.at[base + 2, :H].set(lp["attn_ln_g"])
        vecs = vecs.at[base + 3, :H].set(lp["attn_ln_b"])
        vecs = vecs.at[base + 4, :I].set(lp["i_b"])
        vecs = vecs.at[base + 5, :H].set(lp["o_b"])
        vecs = vecs.at[base + 6, :H].set(lp["out_ln_g"])
        vecs = vecs.at[base + 7, :H].set(lp["out_ln_b"])
    tail = 2 + 8 * L
    vecs = vecs.at[tail, :H].set(params["pool_b"])
    vecs = vecs.at[tail + 1, 0].set(params["dec_b"][0])

    return dict(
        word_emb=params["word_emb"],
        pos_emb=params["pos_emb"],
        type_emb=params["type_emb"],
        w_in=w_in, w_out=w_out, vecs=vecs,
    )


# ---------------- N2Sm2.forward ----------------
@jax.jit
def n2sm2_forward(packed, input_ids, attention_mask, token_type_ids):
    B, S = input_ids.shape
    H = HIDDEN

    # BertEmbeddings gathers stay in JAX (glue); everything else is inside the kernel.
    pos_ids = jnp.arange(S, dtype=jnp.int32)
    emb = (packed["word_emb"][input_ids]
           + packed["pos_emb"][pos_ids][None, :, :]
           + packed["type_emb"][token_type_ids]).astype(jnp.float32).reshape(B * S, H)

    # Combined additive mask: HF extended mask along keys + block-diagonal batch isolation.
    key_mask = ((1.0 - attention_mask.astype(jnp.float32)) * -10000.0).reshape(B * S)
    bidx = jnp.arange(B * S, dtype=jnp.int32) // S
    same_batch = bidx[:, None] == bidx[None, :]
    big_mask = jnp.where(same_batch, key_mask[None, :], jnp.float32(NEG_BIG))   # (BS, BS)

    kern = functools.partial(_fused_forward_kernel, NH=HEADS, D=HEAD_DIM,
                             num_layers=LAYERS, inter=INTER)

    # Single fused pallas_call: no grid, every operand is a full-array VMEM block.
    # (For non-toy batches on v7x, add a grid over batch tiles with
    #  dimension_semantics=("parallel",) to use both TensorCores.)
    out = pl.pallas_call(
        kern,
        out_shape=jax.ShapeDtypeStruct((B * S, OUT_LANES), jnp.float32),
    )(emb, big_mask, packed["w_in"], packed["w_out"], packed["vecs"])

    # Keep only the CLS rows / decoder lane 0.
    return out.reshape(B, S, OUT_LANES)[:, 0, :1]                    # (B, 1) probabilities


if __name__ == "__main__":
    key = jax.random.PRNGKey(0)
    pkey, ikey = jax.random.split(key)
    params = init_params(pkey)
    packed = pack_params(params)         # packed ONCE, outside the jitted call path

    B, S = 2, 8
    input_ids = jax.random.randint(ikey, (B, S), 0, VOCAB, dtype=jnp.int32)
    token_type_ids = jnp.zeros((B, S), jnp.int32)
    attention_mask = jnp.ones((B, S), jnp.int32).at[1, 6:].set(0)    # some padding

    out = n2sm2_forward(packed, input_ids, attention_mask, token_type_ids)
    out = jax.block_until_ready(out)
    assert out.shape == (B, 1) and out.dtype == jnp.float32
    assert bool(jnp.all((out >= 0.0) & (out <= 1.0)))
    print("KERNEL_OK")
</pallas_src>

<mosaic_0001>
module attributes {stable_mosaic.version = 11 : i64} {
  func.func @_fused_forward_kernel(%arg0: memref<16x32xf32, #tpu.memory_space<vmem>>, %arg1: memref<16x16xf32, #tpu.memory_space<vmem>>, %arg2: memref<3x32x384xf32, #tpu.memory_space<vmem>>, %arg3: memref<2x64x32xf32, #tpu.memory_space<vmem>>, %arg4: memref<20x128xf32, #tpu.memory_space<vmem>>, %arg5: memref<16x128xf32, #tpu.memory_space<vmem>>) attributes {dimension_semantics = [], scalar_prefetch = 0 : i64, scratch_operands = 0 : i64, tpu.core_type = #tpu.core_type<tc>} {
    %c0 = arith.constant 0 : index
    %c0_0 = arith.constant 0 : index
    %0 = vector.load %arg1[%c0, %c0_0] : memref<16x16xf32, #tpu.memory_space<vmem>>, vector<16x16xf32>
    %c0_1 = arith.constant 0 : index
    %c0_2 = arith.constant 0 : index
    %1 = vector.load %arg0[%c0_1, %c0_2] : memref<16x32xf32, #tpu.memory_space<vmem>>, vector<16x32xf32>
    %c0_3 = arith.constant 0 : index
    %c0_4 = arith.constant 0 : index
    %2 = vector.load %arg4[%c0_3, %c0_4] : memref<20x128xf32, #tpu.memory_space<vmem>>, vector<1x32xf32>
    %3 = vector.shape_cast %2 : vector<1x32xf32> to vector<32xf32>
    %c1 = arith.constant 1 : index
    %c0_5 = arith.constant 0 : index
    %4 = vector.load %arg4[%c1, %c0_5] : memref<20x128xf32, #tpu.memory_space<vmem>>, vector<1x32xf32>
    %5 = vector.shape_cast %4 : vector<1x32xf32> to vector<32xf32>
    %cst = arith.constant dense<0.000000e+00> : vector<16xf32>
    %6 = vector.multi_reduction <add>, %1, %cst [1] : vector<16x32xf32> to vector<16xf32>
    %7 = vector.shape_cast %6 : vector<16xf32> to vector<16x1xf32>
    %cst_6 = arith.constant 3.200000e+01 : f32
    %8 = vector.broadcast %cst_6 : f32 to vector<16x1xf32>
    %9 = arith.divf %7, %8 : vector<16x1xf32>
    %10 = vector.broadcast %9 : vector<16x1xf32> to vector<16x32xf32>
    %11 = arith.subf %1, %10 : vector<16x32xf32>
    %12 = vector.broadcast %9 : vector<16x1xf32> to vector<16x32xf32>
    %13 = arith.subf %1, %12 : vector<16x32xf32>
    %14 = arith.mulf %11, %13 : vector<16x32xf32>
    %cst_7 = arith.constant dense<0.000000e+00> : vector<16xf32>
    %15 = vector.multi_reduction <add>, %14, %cst_7 [1] : vector<16x32xf32> to vector<16xf32>
    %16 = vector.shape_cast %15 : vector<16xf32> to vector<16x1xf32>
    %cst_8 = arith.constant 3.200000e+01 : f32
    %17 = vector.broadcast %cst_8 : f32 to vector<16x1xf32>
    %18 = arith.divf %16, %17 : vector<16x1xf32>
    %19 = vector.broadcast %9 : vector<16x1xf32> to vector<16x32xf32>
    %20 = arith.subf %1, %19 : vector<16x32xf32>
    %cst_9 = arith.constant 9.99999996E-13 : f32
    %21 = vector.broadcast %cst_9 : f32 to vector<16x1xf32>
    %22 = arith.addf %18, %21 : vector<16x1xf32>
    %23 = math.rsqrt %22 : vector<16x1xf32>
    %24 = vector.broadcast %23 : vector<16x1xf32> to vector<16x32xf32>
    %25 = arith.mulf %20, %24 : vector<16x32xf32>
    %26 = vector.shape_cast %3 : vector<32xf32> to vector<1x32xf32>
    %27 = vector.broadcast %26 : vector<1x32xf32> to vector<16x32xf32>
    %28 = arith.mulf %25, %27 : vector<16x32xf32>
    %29 = vector.shape_cast %5 : vector<32xf32> to vector<1x32xf32>
    %30 = vector.broadcast %29 : vector<1x32xf32> to vector<16x32xf32>
    %31 = arith.addf %28, %30 : vector<16x32xf32>
    %c0_10 = arith.constant 0 : index
    %c0_11 = arith.constant 0 : index
    %c0_12 = arith.constant 0 : index
    %32 = vector.load %arg2[%c0_10, %c0_11, %c0_12] : memref<3x32x384xf32, #tpu.memory_space<vmem>>, vector<1x32x96xf32>
    %33 = vector.shape_cast %32 : vector<1x32x96xf32> to vector<32x96xf32>
    %c0_13 = arith.constant 0 : index
    %c0_14 = arith.constant 0 : index
    %c128 = arith.constant 128 : index
    %34 = vector.load %arg2[%c0_13, %c0_14, %c128] : memref<3x32x384xf32, #tpu.memory_space<vmem>>, vector<1x32x32xf32>
    %35 = vector.shape_cast %34 : vector<1x32x32xf32> to vector<32x32xf32>
    %c0_15 = arith.constant 0 : index
    %c0_16 = arith.constant 0 : index
    %c256 = arith.constant 256 : index
    %36 = vector.load %arg2[%c0_15, %c0_16, %c256] : memref<3x32x384xf32, #tpu.memory_space<vmem>>, vector<1x32x64xf32>
    %37 = vector.shape_cast %36 : vector<1x32x64xf32> to vector<32x64xf32>
    %c0_17 = arith.constant 0 : index
    %c0_18 = arith.constant 0 : index
    %c0_19 = arith.constant 0 : index
    %38 = vector.load %arg3[%c0_17, %c0_18, %c0_19] : memref<2x64x32xf32, #tpu.memory_space<vmem>>, vector<1x64x32xf32>
    %39 = vector.shape_cast %38 : vector<1x64x32xf32> to vector<64x32xf32>
    %cst_20 = arith.constant dense<0.000000e+00> : vector<16x96xf32>
    %40 = tpu.matmul %31, %33, %cst_20 {dimension_numbers = #tpu.dot_dimension_numbers<[1], [0], [0], [1], [0, 0, 1, 1], [], []>} : vector<16x32xf32>, vector<32x96xf32>, vector<16x96xf32> -> vector<16x96xf32>
    %c2 = arith.constant 2 : index
    %c0_21 = arith.constant 0 : index
    %41 = vector.load %arg4[%c2, %c0_21] : memref<20x128xf32, #tpu.memory_space<vmem>>, vector<1x96xf32>
    %42 = vector.shape_cast %41 : vector<1x96xf32> to vector<96xf32>
    %43 = vector.shape_cast %42 : vector<96xf32> to vector<1x96xf32>
    %44 = vector.broadcast %43 : vector<1x96xf32> to vector<16x96xf32>
    %45 = arith.addf %40, %44 : vector<16x96xf32>
    %46 = vector.extract_strided_slice %45 {offsets = [0, 0], sizes = [16, 16], strides = [1, 1]} : vector<16x96xf32> to vector<16x16xf32>
    %47 = vector.extract_strided_slice %45 {offsets = [0, 32], sizes = [16, 16], strides = [1, 1]} : vector<16x96xf32> to vector<16x16xf32>
    %48 = vector.extract_strided_slice %45 {offsets = [0, 64], sizes = [16, 16], strides = [1, 1]} : vector<16x96xf32> to vector<16x16xf32>
    "tpu.trace_start"() <{level = 10 : i32, message = "qd,kd->qk"}> : () -> ()
    %cst_22 = arith.constant dense<0.000000e+00> : vector<16x16xf32>
    %49 = tpu.matmul %46, %47, %cst_22 {dimension_numbers = #tpu.dot_dimension_numbers<[1], [1], [0], [0], [0, 0, 1, 0], [], []>} : vector<16x16xf32>, vector<16x16xf32>, vector<16x16xf32> -> vector<16x16xf32>
    "tpu.trace_stop"() : () -> ()
    %50 = arith.addf %49, %0 : vector<16x16xf32>
    %cst_23 = arith.constant dense<0xFF800000> : vector<16xf32>
    %51 = vector.multi_reduction <maximumf>, %50, %cst_23 [1] : vector<16x16xf32> to vector<16xf32>
    %52 = vector.shape_cast %51 : vector<16xf32> to vector<16x1xf32>
    %53 = vector.broadcast %52 : vector<16x1xf32> to vector<16x16xf32>
    %54 = arith.subf %50, %53 : vector<16x16xf32>
    %55 = math.exp %54 : vector<16x16xf32>
    %cst_24 = arith.constant dense<0.000000e+00> : vector<16xf32>
    %56 = vector.multi_reduction <add>, %55, %cst_24 [1] : vector<16x16xf32> to vector<16xf32>
    %57 = vector.shape_cast %56 : vector<16xf32> to vector<16x1xf32>
    %58 = tpu.reciprocal %57 : vector<16x1xf32> -> vector<16x1xf32>
    %59 = vector.broadcast %58 : vector<16x1xf32> to vector<16x16xf32>
    %60 = arith.mulf %55, %59 : vector<16x16xf32>
    %cst_25 = arith.constant dense<0.000000e+00> : vector<16x16xf32>
    %61 = tpu.matmul %60, %48, %cst_25 {dimension_numbers = #tpu.dot_dimension_numbers<[1], [0], [0], [1], [0, 0, 1, 1], [], []>} : vector<16x16xf32>, vector<16x16xf32>, vector<16x16xf32> -> vector<16x16xf32>
    %62 = vector.extract_strided_slice %45 {offsets = [0, 16], sizes = [16, 16], strides = [1, 1]} : vector<16x96xf32> to vector<16x16xf32>
    %63 = vector.extract_strided_slice %45 {offsets = [0, 48], sizes = [16, 16], strides = [1, 1]} : vector<16x96xf32> to vector<16x16xf32>
    %64 = vector.extract_strided_slice %45 {offsets = [0, 80], sizes = [16, 16], strides = [1, 1]} : vector<16x96xf32> to vector<16x16xf32>
    "tpu.trace_start"() <{level = 10 : i32, message = "qd,kd->qk"}> : () -> ()
    %cst_26 = arith.constant dense<0.000000e+00> : vector<16x16xf32>
    %65 = tpu.matmul %62, %63, %cst_26 {dimension_numbers = #tpu.dot_dimension_numbers<[1], [1], [0], [0], [0, 0, 1, 0], [], []>} : vector<16x16xf32>, vector<16x16xf32>, vector<16x16xf32> -> vector<16x16xf32>
    "tpu.trace_stop"() : () -> ()
    %66 = arith.addf %65, %0 : vector<16x16xf32>
    %cst_27 = arith.constant dense<0xFF800000> : vector<16xf32>
    %67 = vector.multi_reduction <maximumf>, %66, %cst_27 [1] : vector<16x16xf32> to vector<16xf32>
    %68 = vector.shape_cast %67 : vector<16xf32> to vector<16x1xf32>
    %69 = vector.broadcast %68 : vector<16x1xf32> to vector<16x16xf32>
    %70 = arith.subf %66, %69 : vector<16x16xf32>
    %71 = math.exp %70 : vector<16x16xf32>
    %cst_28 = arith.constant dense<0.000000e+00> : vector<16xf32>
    %72 = vector.multi_reduction <add>, %71, %cst_28 [1] : vector<16x16xf32> to vector<16xf32>
    %73 = vector.shape_cast %72 : vector<16xf32> to vector<16x1xf32>
    %74 = tpu.reciprocal %73 : vector<16x1xf32> -> vector<16x1xf32>
    %75 = vector.broadcast %74 : vector<16x1xf32> to vector<16x16xf32>
    %76 = arith.mulf %71, %75 : vector<16x16xf32>
    %cst_29 = arith.constant dense<0.000000e+00> : vector<16x16xf32>
    %77 = tpu.matmul %76, %64, %cst_29 {dimension_numbers = #tpu.dot_dimension_numbers<[1], [0], [0], [1], [0, 0, 1, 1], [], []>} : vector<16x16xf32>, vector<16x16xf32>, vector<16x16xf32> -> vector<16x16xf32>
    %78 = tpu.concatenate %61, %77 in 1 : vector<16x16xf32>, vector<16x16xf32> -> vector<16x32xf32>
    %cst_30 = arith.constant dense<0.000000e+00> : vector<16x32xf32>
    %79 = tpu.matmul %78, %35, %cst_30 {dimension_numbers = #tpu.dot_dimension_numbers<[1], [0], [0], [1], [0, 0, 1, 1], [], []>} : vector<16x32xf32>, vector<32x32xf32>, vector<16x32xf32> -> vector<16x32xf32>
    %c3 = arith.constant 3 : index
    %c0_31 = arith.constant 0 : index
    %80 = vector.load %arg4[%c3, %c0_31] : memref<20x128xf32, #tpu.memory_space<vmem>>, vector<1x32xf32>
    %81 = vector.shape_cast %80 : vector<1x32xf32> to vector<32xf32>
    %82 = vector.shape_cast %81 : vector<32xf32> to vector<1x32xf32>
    %83 = vector.broadcast %82 : vector<1x32xf32> to vector<16x32xf32>
    %84 = arith.addf %79, %83 : vector<16x32xf32>
    %85 = arith.addf %31, %84 : vector<16x32xf32>
    %c4 = arith.constant 4 : index
    %c0_32 = arith.constant 0 : index
    %86 = vector.load %arg4[%c4, %c0_32] : memref<20x128xf32, #tpu.memory_space<vmem>>, vector<1x32xf32>
    %87 = vector.shape_cast %86 : vector<1x32xf32> to vector<32xf32>
    %c5 = arith.constant 5 : index
    %c0_33 = arith.constant 0 : index
    %88 = vector.load %arg4[%c5, %c0_33] : memref<20x128xf32, #tpu.memory_space<vmem>>, vector<1x32xf32>
    %89 = vector.shape_cast %88 : vector<1x32xf32> to vector<32xf32>
    %cst_34 = arith.constant dense<0.000000e+00> : vector<16xf32>
    %90 = vector.multi_reduction <add>, %85, %cst_34 [1] : vector<16x32xf32> to vector<16xf32>
    %91 = vector.shape_cast %90 : vector<16xf32> to vector<16x1xf32>
    %cst_35 = arith.constant 3.200000e+01 : f32
    %92 = vector.broadcast %cst_35 : f32 to vector<16x1xf32>
    %93 = arith.divf %91, %92 : vector<16x1xf32>
    %94 = vector.broadcast %93 : vector<16x1xf32> to vector<16x32xf32>
    %95 = arith.subf %85, %94 : vector<16x32xf32>
    %96 = vector.broadcast %93 : vector<16x1xf32> to vector<16x32xf32>
    %97 = arith.subf %85, %96 : vector<16x32xf32>
    %98 = arith.mulf %95, %97 : vector<16x32xf32>
    %cst_36 = arith.constant dense<0.000000e+00> : vector<16xf32>
    %99 = vector.multi_reduction <add>, %98, %cst_36 [1] : vector<16x32xf32> to vector<16xf32>
    %100 = vector.shape_cast %99 : vector<16xf32> to vector<16x1xf32>
    %cst_37 = arith.constant 3.200000e+01 : f32
    %101 = vector.broadcast %cst_37 : f32 to vector<16x1xf32>
    %102 = arith.divf %100, %101 : vector<16x1xf32>
    %103 = vector.broadcast %93 : vector<16x1xf32> to vector<16x32xf32>
    %104 = arith.subf %85, %103 : vector<16x32xf32>
    %cst_38 = arith.constant 9.99999996E-13 : f32
    %105 = vector.broadcast %cst_38 : f32 to vector<16x1xf32>
    %106 = arith.addf %102, %105 : vector<16x1xf32>
    %107 = math.rsqrt %106 : vector<16x1xf32>
    %108 = vector.broadcast %107 : vector<16x1xf32> to vector<16x32xf32>
    %109 = arith.mulf %104, %108 : vector<16x32xf32>
    %110 = vector.shape_cast %87 : vector<32xf32> to vector<1x32xf32>
    %111 = vector.broadcast %110 : vector<1x32xf32> to vector<16x32xf32>
    %112 = arith.mulf %109, %111 : vector<16x32xf32>
    %113 = vector.shape_cast %89 : vector<32xf32> to vector<1x32xf32>
    %114 = vector.broadcast %113 : vector<1x32xf32> to vector<16x32xf32>
    %115 = arith.addf %112, %114 : vector<16x32xf32>
    %cst_39 = arith.constant dense<0.000000e+00> : vector<16x64xf32>
    %116 = tpu.matmul %115, %37, %cst_39 {dimension_numbers = #tpu.dot_dimension_numbers<[1], [0], [0], [1], [0, 0, 1, 1], [], []>} : vector<16x32xf32>, vector<32x64xf32>, vector<16x64xf32> -> vector<16x64xf32>
    %c6 = arith.constant 6 : index
    %c0_40 = arith.constant 0 : index
    %117 = vector.load %arg4[%c6, %c0_40] : memref<20x128xf32, #tpu.memory_space<vmem>>, vector<1x64xf32>
    %118 = vector.shape_cast %117 : vector<1x64xf32> to vector<64xf32>
    %119 = vector.shape_cast %118 : vector<64xf32> to vector<1x64xf32>
    %120 = vector.broadcast %119 : vector<1x64xf32> to vector<16x64xf32>
    %121 = arith.addf %116, %120 : vector<16x64xf32>
    %cst_41 = arith.constant 5.000000e-01 : f32
    %122 = vector.broadcast %cst_41 : f32 to vector<16x64xf32>
    %123 = arith.mulf %122, %121 : vector<16x64xf32>
    %cst_42 = arith.constant 0.707106769 : f32
    %124 = vector.broadcast %cst_42 : f32 to vector<16x64xf32>
    %125 = arith.mulf %121, %124 : vector<16x64xf32>
    %cst_43 = arith.constant 0.000000e+00 : f32
    %126 = vector.broadcast %cst_43 : f32 to vector<16x64xf32>
    %127 = arith.cmpf olt, %125, %126 : vector<16x64xf32>
    %cst_44 = arith.constant -1.000000e+00 : f32
    %cst_45 = arith.constant 1.000000e+00 : f32
    %128 = vector.broadcast %cst_44 : f32 to vector<16x64xf32>
    %129 = vector.broadcast %cst_45 : f32 to vector<16x64xf32>
    %130 = arith.select %127, %128, %129 : vector<16x64xi1>, vector<16x64xf32>
    %131 = math.absf %125 : vector<16x64xf32>
    %cst_46 = arith.constant 0.327591091 : f32
    %132 = vector.broadcast %cst_46 : f32 to vector<16x64xf32>
    %133 = arith.mulf %132, %131 : vector<16x64xf32>
    %cst_47 = arith.constant 1.000000e+00 : f32
    %134 = vector.broadcast %cst_47 : f32 to vector<16x64xf32>
    %135 = arith.addf %134, %133 : vector<16x64xf32>
    %cst_48 = arith.constant 1.000000e+00 : f32
    %136 = vector.broadcast %cst_48 : f32 to vector<16x64xf32>
    %137 = arith.divf %136, %135 : vector<16x64xf32>
    %cst_49 = arith.constant 1.06140542 : f32
    %138 = vector.broadcast %cst_49 : f32 to vector<16x64xf32>
    %139 = arith.mulf %138, %137 : vector<16x64xf32>
    %cst_50 = arith.constant -1.45315206 : f32
    %140 = vector.broadcast %cst_50 : f32 to vector<16x64xf32>
    %141 = arith.addf %139, %140 : vector<16x64xf32>
    %142 = arith.mulf %141, %137 : vector<16x64xf32>
    %cst_51 = arith.constant 1.42141378 : f32
    %143 = vector.broadcast %cst_51 : f32 to vector<16x64xf32>
    %144 = arith.addf %142, %143 : vector<16x64xf32>
    %145 = arith.mulf %144, %137 : vector<16x64xf32>
    %cst_52 = arith.constant -0.284496725 : f32
    %146 = vector.broadcast %cst_52 : f32 to vector<16x64xf32>
    %147 = arith.addf %145, %146 : vector<16x64xf32>
    %148 = arith.mulf %147, %137 : vector<16x64xf32>
    %cst_53 = arith.constant 0.254829586 : f32
    %149 = vector.broadcast %cst_53 : f32 to vector<16x64xf32>
    %150 = arith.addf %148, %149 : vector<16x64xf32>
    %151 = arith.mulf %150, %137 : vector<16x64xf32>
    %cst_54 = arith.constant 0.000000e+00 : f32
    %152 = vector.broadcast %cst_54 : f32 to vector<16x64xf32>
    %153 = arith.subf %152, %131 : vector<16x64xf32>
    %154 = arith.mulf %153, %131 : vector<16x64xf32>
    %155 = math.exp %154 : vector<16x64xf32>
    %156 = arith.mulf %151, %155 : vector<16x64xf32>
    %cst_55 = arith.constant 1.000000e+00 : f32
    %157 = vector.broadcast %cst_55 : f32 to vector<16x64xf32>
    %158 = arith.subf %157, %156 : vector<16x64xf32>
    %159 = arith.mulf %130, %158 : vector<16x64xf32>
    %cst_56 = arith.constant 1.000000e+00 : f32
    %160 = vector.broadcast %cst_56 : f32 to vector<16x64xf32>
    %161 = arith.addf %160, %159 : vector<16x64xf32>
    %162 = arith.mulf %123, %161 : vector<16x64xf32>
    %cst_57 = arith.constant dense<0.000000e+00> : vector<16x32xf32>
    %163 = tpu.matmul %162, %39, %cst_57 {dimension_numbers = #tpu.dot_dimension_numbers<[1], [0], [0], [1], [0, 0, 1, 1], [], []>} : vector<16x64xf32>, vector<64x32xf32>, vector<16x32xf32> -> vector<16x32xf32>
    %c7 = arith.constant 7 : index
    %c0_58 = arith.constant 0 : index
    %164 = vector.load %arg4[%c7, %c0_58] : memref<20x128xf32, #tpu.memory_space<vmem>>, vector<1x32xf32>
    %165 = vector.shape_cast %164 : vector<1x32xf32> to vector<32xf32>
    %166 = vector.shape_cast %165 : vector<32xf32> to vector<1x32xf32>
    %167 = vector.broadcast %166 : vector<1x32xf32> to vector<16x32xf32>
    %168 = arith.addf %163, %167 : vector<16x32xf32>
    %169 = arith.addf %115, %168 : vector<16x32xf32>
    %c8 = arith.constant 8 : index
    %c0_59 = arith.constant 0 : index
    %170 = vector.load %arg4[%c8, %c0_59] : memref<20x128xf32, #tpu.memory_space<vmem>>, vector<1x32xf32>
    %171 = vector.shape_cast %170 : vector<1x32xf32> to vector<32xf32>
    %c9 = arith.constant 9 : index
    %c0_60 = arith.constant 0 : index
    %172 = vector.load %arg4[%c9, %c0_60] : memref<20x128xf32, #tpu.memory_space<vmem>>, vector<1x32xf32>
    %173 = vector.shape_cast %172 : vector<1x32xf32> to vector<32xf32>
    %cst_61 = arith.constant dense<0.000000e+00> : vector<16xf32>
    %174 = vector.multi_reduction <add>, %169, %cst_61 [1] : vector<16x32xf32> to vector<16xf32>
    %175 = vector.shape_cast %174 : vector<16xf32> to vector<16x1xf32>
    %cst_62 = arith.constant 3.200000e+01 : f32
    %176 = vector.broadcast %cst_62 : f32 to vector<16x1xf32>
    %177 = arith.divf %175, %176 : vector<16x1xf32>
    %178 = vector.broadcast %177 : vector<16x1xf32> to vector<16x32xf32>
    %179 = arith.subf %169, %178 : vector<16x32xf32>
    %180 = vector.broadcast %177 : vector<16x1xf32> to vector<16x32xf32>
    %181 = arith.subf %169, %180 : vector<16x32xf32>
    %182 = arith.mulf %179, %181 : vector<16x32xf32>
    %cst_63 = arith.constant dense<0.000000e+00> : vector<16xf32>
    %183 = vector.multi_reduction <add>, %182, %cst_63 [1] : vector<16x32xf32> to vector<16xf32>
    %184 = vector.shape_cast %183 : vector<16xf32> to vector<16x1xf32>
    %cst_64 = arith.constant 3.200000e+01 : f32
    %185 = vector.broadcast %cst_64 : f32 to vector<16x1xf32>
    %186 = arith.divf %184, %185 : vector<16x1xf32>
    %187 = vector.broadcast %177 : vector<16x1xf32> to vector<16x32xf32>
    %188 = arith.subf %169, %187 : vector<16x32xf32>
    %cst_65 = arith.constant 9.99999996E-13 : f32
    %189 = vector.broadcast %cst_65 : f32 to vector<16x1xf32>
    %190 = arith.addf %186, %189 : vector<16x1xf32>
    %191 = math.rsqrt %190 : vector<16x1xf32>
    %192 = vector.broadcast %191 : vector<16x1xf32> to vector<16x32xf32>
    %193 = arith.mulf %188, %192 : vector<16x32xf32>
    %194 = vector.shape_cast %171 : vector<32xf32> to vector<1x32xf32>
    %195 = vector.broadcast %194 : vector<1x32xf32> to vector<16x32xf32>
    %196 = arith.mulf %193, %195 : vector<16x32xf32>
    %197 = vector.shape_cast %173 : vector<32xf32> to vector<1x32xf32>
    %198 = vector.broadcast %197 : vector<1x32xf32> to vector<16x32xf32>
    %199 = arith.addf %196, %198 : vector<16x32xf32>
    %c1_66 = arith.constant 1 : index
    %c0_67 = arith.constant 0 : index
    %c0_68 = arith.constant 0 : index
    %200 = vector.load %arg2[%c1_66, %c0_67, %c0_68] : memref<3x32x384xf32, #tpu.memory_space<vmem>>, vector<1x32x96xf32>
    %201 = vector.shape_cast %200 : vector<1x32x96xf32> to vector<32x96xf32>
    %c1_69 = arith.constant 1 : index
    %c0_70 = arith.constant 0 : index
    %c128_71 = arith.constant 128 : index
    %202 = vector.load %arg2[%c1_69, %c0_70, %c128_71] : memref<3x32x384xf32, #tpu.memory_space<vmem>>, vector<1x32x32xf32>
    %203 = vector.shape_cast %202 : vector<1x32x32xf32> to vector<32x32xf32>
    %c1_72 = arith.constant 1 : index
    %c0_73 = arith.constant 0 : index
    %c256_74 = arith.constant 256 : index
    %204 = vector.load %arg2[%c1_72, %c0_73, %c256_74] : memref<3x32x384xf32, #tpu.memory_space<vmem>>, vector<1x32x64xf32>
    %205 = vector.shape_cast %204 : vector<1x32x64xf32> to vector<32x64xf32>
    %c1_75 = arith.constant 1 : index
    %c0_76 = arith.constant 0 : index
    %c0_77 = arith.constant 0 : index
    %206 = vector.load %arg3[%c1_75, %c0_76, %c0_77] : memref<2x64x32xf32, #tpu.memory_space<vmem>>, vector<1x64x32xf32>
    %207 = vector.shape_cast %206 : vector<1x64x32xf32> to vector<64x32xf32>
    %cst_78 = arith.constant dense<0.000000e+00> : vector<16x96xf32>
    %208 = tpu.matmul %199, %201, %cst_78 {dimension_numbers = #tpu.dot_dimension_numbers<[1], [0], [0], [1], [0, 0, 1, 1], [], []>} : vector<16x32xf32>, vector<32x96xf32>, vector<16x96xf32> -> vector<16x96xf32>
    %c10 = arith.constant 10 : index
    %c0_79 = arith.constant 0 : index
    %209 = vector.load %arg4[%c10, %c0_79] : memref<20x128xf32, #tpu.memory_space<vmem>>, vector<1x96xf32>
    %210 = vector.shape_cast %209 : vector<1x96xf32> to vector<96xf32>
    %211 = vector.shape_cast %210 : vector<96xf32> to vector<1x96xf32>
    %212 = vector.broadcast %211 : vector<1x96xf32> to vector<16x96xf32>
    %213 = arith.addf %208, %212 : vector<16x96xf32>
    %214 = vector.extract_strided_slice %213 {offsets = [0, 0], sizes = [16, 16], strides = [1, 1]} : vector<16x96xf32> to vector<16x16xf32>
    %215 = vector.extract_strided_slice %213 {offsets = [0, 32], sizes = [16, 16], strides = [1, 1]} : vector<16x96xf32> to vector<16x16xf32>
    %216 = vector.extract_strided_slice %213 {offsets = [0, 64], sizes = [16, 16], strides = [1, 1]} : vector<16x96xf32> to vector<16x16xf32>
    "tpu.trace_start"() <{level = 10 : i32, message = "qd,kd->qk"}> : () -> ()
    %cst_80 = arith.constant dense<0.000000e+00> : vector<16x16xf32>
    %217 = tpu.matmul %214, %215, %cst_80 {dimension_numbers = #tpu.dot_dimension_numbers<[1], [1], [0], [0], [0, 0, 1, 0], [], []>} : vector<16x16xf32>, vector<16x16xf32>, vector<16x16xf32> -> vector<16x16xf32>
    "tpu.trace_stop"() : () -> ()
    %218 = arith.addf %217, %0 : vector<16x16xf32>
    %cst_81 = arith.constant dense<0xFF800000> : vector<16xf32>
    %219 = vector.multi_reduction <maximumf>, %218, %cst_81 [1] : vector<16x16xf32> to vector<16xf32>
    %220 = vector.shape_cast %219 : vector<16xf32> to vector<16x1xf32>
    %221 = vector.broadcast %220 : vector<16x1xf32> to vector<16x16xf32>
    %222 = arith.subf %218, %221 : vector<16x16xf32>
    %223 = math.exp %222 : vector<16x16xf32>
    %cst_82 = arith.constant dense<0.000000e+00> : vector<16xf32>
    %224 = vector.multi_reduction <add>, %223, %cst_82 [1] : vector<16x16xf32> to vector<16xf32>
    %225 = vector.shape_cast %224 : vector<16xf32> to vector<16x1xf32>
    %226 = tpu.reciprocal %225 : vector<16x1xf32> -> vector<16x1xf32>
    %227 = vector.broadcast %226 : vector<16x1xf32> to vector<16x16xf32>
    %228 = arith.mulf %223, %227 : vector<16x16xf32>
    %cst_83 = arith.constant dense<0.000000e+00> : vector<16x16xf32>
    %229 = tpu.matmul %228, %216, %cst_83 {dimension_numbers = #tpu.dot_dimension_numbers<[1], [0], [0], [1], [0, 0, 1, 1], [], []>} : vector<16x16xf32>, vector<16x16xf32>, vector<16x16xf32> -> vector<16x16xf32>
    %230 = vector.extract_strided_slice %213 {offsets = [0, 16], sizes = [16, 16], strides = [1, 1]} : vector<16x96xf32> to vector<16x16xf32>
    %231 = vector.extract_strided_slice %213 {offsets = [0, 48], sizes = [16, 16], strides = [1, 1]} : vector<16x96xf32> to vector<16x16xf32>
    %232 = vector.extract_strided_slice %213 {offsets = [0, 80], sizes = [16, 16], strides = [1, 1]} : vector<16x96xf32> to vector<16x16xf32>
    "tpu.trace_start"() <{level = 10 : i32, message = "qd,kd->qk"}> : () -> ()
    %cst_84 = arith.constant dense<0.000000e+00> : vector<16x16xf32>
    %233 = tpu.matmul %230, %231, %cst_84 {dimension_numbers = #tpu.dot_dimension_numbers<[1], [1], [0], [0], [0, 0, 1, 0], [], []>} : vector<16x16xf32>, vector<16x16xf32>, vector<16x16xf32> -> vector<16x16xf32>
    "tpu.trace_stop"() : () -> ()
    %234 = arith.addf %233, %0 : vector<16x16xf32>
    %cst_85 = arith.constant dense<0xFF800000> : vector<16xf32>
    %235 = vector.multi_reduction <maximumf>, %234, %cst_85 [1] : vector<16x16xf32> to vector<16xf32>
    %236 = vector.shape_cast %235 : vector<16xf32> to vector<16x1xf32>
    %237 = vector.broadcast %236 : vector<16x1xf32> to vector<16x16xf32>
    %238 = arith.subf %234, %237 : vector<16x16xf32>
    %239 = math.exp %238 : vector<16x16xf32>
    %cst_86 = arith.constant dense<0.000000e+00> : vector<16xf32>
    %240 = vector.multi_reduction <add>, %239, %cst_86 [1] : vector<16x16xf32> to vector<16xf32>
    %241 = vector.shape_cast %240 : vector<16xf32> to vector<16x1xf32>
    %242 = tpu.reciprocal %241 : vector<16x1xf32> -> vector<16x1xf32>
    %243 = vector.broadcast %242 : vector<16x1xf32> to vector<16x16xf32>
    %244 = arith.mulf %239, %243 : vector<16x16xf32>
    %cst_87 = arith.constant dense<0.000000e+00> : vector<16x16xf32>
    %245 = tpu.matmul %244, %232, %cst_87 {dimension_numbers = #tpu.dot_dimension_numbers<[1], [0], [0], [1], [0, 0, 1, 1], [], []>} : vector<16x16xf32>, vector<16x16xf32>, vector<16x16xf32> -> vector<16x16xf32>
    %246 = tpu.concatenate %229, %245 in 1 : vector<16x16xf32>, vector<16x16xf32> -> vector<16x32xf32>
    %cst_88 = arith.constant dense<0.000000e+00> : vector<16x32xf32>
    %247 = tpu.matmul %246, %203, %cst_88 {dimension_numbers = #tpu.dot_dimension_numbers<[1], [0], [0], [1], [0, 0, 1, 1], [], []>} : vector<16x32xf32>, vector<32x32xf32>, vector<16x32xf32> -> vector<16x32xf32>
    %c11 = arith.constant 11 : index
    %c0_89 = arith.constant 0 : index
    %248 = vector.load %arg4[%c11, %c0_89] : memref<20x128xf32, #tpu.memory_space<vmem>>, vector<1x32xf32>
    %249 = vector.shape_cast %248 : vector<1x32xf32> to vector<32xf32>
    %250 = vector.shape_cast %249 : vector<32xf32> to vector<1x32xf32>
    %251 = vector.broadcast %250 : vector<1x32xf32> to vector<16x32xf32>
    %252 = arith.addf %247, %251 : vector<16x32xf32>
    %253 = arith.addf %199, %252 : vector<16x32xf32>
    %c12 = arith.constant 12 : index
    %c0_90 = arith.constant 0 : index
    %254 = vector.load %arg4[%c12, %c0_90] : memref<20x128xf32, #tpu.memory_space<vmem>>, vector<1x32xf32>
    %255 = vector.shape_cast %254 : vector<1x32xf32> to vector<32xf32>
    %c13 = arith.constant 13 : index
    %c0_91 = arith.constant 0 : index
    %256 = vector.load %arg4[%c13, %c0_91] : memref<20x128xf32, #tpu.memory_space<vmem>>, vector<1x32xf32>
    %257 = vector.shape_cast %256 : vector<1x32xf32> to vector<32xf32>
    %cst_92 = arith.constant dense<0.000000e+00> : vector<16xf32>
    %258 = vector.multi_reduction <add>, %253, %cst_92 [1] : vector<16x32xf32> to vector<16xf32>
    %259 = vector.shape_cast %258 : vector<16xf32> to vector<16x1xf32>
    %cst_93 = arith.constant 3.200000e+01 : f32
    %260 = vector.broadcast %cst_93 : f32 to vector<16x1xf32>
    %261 = arith.divf %259, %260 : vector<16x1xf32>
    %262 = vector.broadcast %261 : vector<16x1xf32> to vector<16x32xf32>
    %263 = arith.subf %253, %262 : vector<16x32xf32>
    %264 = vector.broadcast %261 : vector<16x1xf32> to vector<16x32xf32>
    %265 = arith.subf %253, %264 : vector<16x32xf32>
    %266 = arith.mulf %263, %265 : vector<16x32xf32>
    %cst_94 = arith.constant dense<0.000000e+00> : vector<16xf32>
    %267 = vector.multi_reduction <add>, %266, %cst_94 [1] : vector<16x32xf32> to vector<16xf32>
    %268 = vector.shape_cast %267 : vector<16xf32> to vector<16x1xf32>
    %cst_95 = arith.constant 3.200000e+01 : f32
    %269 = vector.broadcast %cst_95 : f32 to vector<16x1xf32>
    %270 = arith.divf %268, %269 : vector<16x1xf32>
    %271 = vector.broadcast %261 : vector<16x1xf32> to vector<16x32xf32>
    %272 = arith.subf %253, %271 : vector<16x32xf32>
    %cst_96 = arith.constant 9.99999996E-13 : f32
    %273 = vector.broadcast %cst_96 : f32 to vector<16x1xf32>
    %274 = arith.addf %270, %273 : vector<16x1xf32>
    %275 = math.rsqrt %274 : vector<16x1xf32>
    %276 = vector.broadcast %275 : vector<16x1xf32> to vector<16x32xf32>
    %277 = arith.mulf %272, %276 : vector<16x32xf32>
    %278 = vector.shape_cast %255 : vector<32xf32> to vector<1x32xf32>
    %279 = vector.broadcast %278 : vector<1x32xf32> to vector<16x32xf32>
    %280 = arith.mulf %277, %279 : vector<16x32xf32>
    %281 = vector.shape_cast %257 : vector<32xf32> to vector<1x32xf32>
    %282 = vector.broadcast %281 : vector<1x32xf32> to vector<16x32xf32>
    %283 = arith.addf %280, %282 : vector<16x32xf32>
    %cst_97 = arith.constant dense<0.000000e+00> : vector<16x64xf32>
    %284 = tpu.matmul %283, %205, %cst_97 {dimension_numbers = #tpu.dot_dimension_numbers<[1], [0], [0], [1], [0, 0, 1, 1], [], []>} : vector<16x32xf32>, vector<32x64xf32>, vector<16x64xf32> -> vector<16x64xf32>
    %c14 = arith.constant 14 : index
    %c0_98 = arith.constant 0 : index
    %285 = vector.load %arg4[%c14, %c0_98] : memref<20x128xf32, #tpu.memory_space<vmem>>, vector<1x64xf32>
    %286 = vector.shape_cast %285 : vector<1x64xf32> to vector<64xf32>
    %287 = vector.shape_cast %286 : vector<64xf32> to vector<1x64xf32>
    %288 = vector.broadcast %287 : vector<1x64xf32> to vector<16x64xf32>
    %289 = arith.addf %284, %288 : vector<16x64xf32>
    %cst_99 = arith.constant 5.000000e-01 : f32
    %290 = vector.broadcast %cst_99 : f32 to vector<16x64xf32>
    %291 = arith.mulf %290, %289 : vector<16x64xf32>
    %cst_100 = arith.constant 0.707106769 : f32
    %292 = vector.broadcast %cst_100 : f32 to vector<16x64xf32>
    %293 = arith.mulf %289, %292 : vector<16x64xf32>
    %cst_101 = arith.constant 0.000000e+00 : f32
    %294 = vector.broadcast %cst_101 : f32 to vector<16x64xf32>
    %295 = arith.cmpf olt, %293, %294 : vector<16x64xf32>
    %cst_102 = arith.constant -1.000000e+00 : f32
    %cst_103 = arith.constant 1.000000e+00 : f32
    %296 = vector.broadcast %cst_102 : f32 to vector<16x64xf32>
    %297 = vector.broadcast %cst_103 : f32 to vector<16x64xf32>
    %298 = arith.select %295, %296, %297 : vector<16x64xi1>, vector<16x64xf32>
    %299 = math.absf %293 : vector<16x64xf32>
    %cst_104 = arith.constant 0.327591091 : f32
    %300 = vector.broadcast %cst_104 : f32 to vector<16x64xf32>
    %301 = arith.mulf %300, %299 : vector<16x64xf32>
    %cst_105 = arith.constant 1.000000e+00 : f32
    %302 = vector.broadcast %cst_105 : f32 to vector<16x64xf32>
    %303 = arith.addf %302, %301 : vector<16x64xf32>
    %cst_106 = arith.constant 1.000000e+00 : f32
    %304 = vector.broadcast %cst_106 : f32 to vector<16x64xf32>
    %305 = arith.divf %304, %303 : vector<16x64xf32>
    %cst_107 = arith.constant 1.06140542 : f32
    %306 = vector.broadcast %cst_107 : f32 to vector<16x64xf32>
    %307 = arith.mulf %306, %305 : vector<16x64xf32>
    %cst_108 = arith.constant -1.45315206 : f32
    %308 = vector.broadcast %cst_108 : f32 to vector<16x64xf32>
    %309 = arith.addf %307, %308 : vector<16x64xf32>
    %310 = arith.mulf %309, %305 : vector<16x64xf32>
    %cst_109 = arith.constant 1.42141378 : f32
    %311 = vector.broadcast %cst_109 : f32 to vector<16x64xf32>
    %312 = arith.addf %310, %311 : vector<16x64xf32>
    %313 = arith.mulf %312, %305 : vector<16x64xf32>
    %cst_110 = arith.constant -0.284496725 : f32
    %314 = vector.broadcast %cst_110 : f32 to vector<16x64xf32>
    %315 = arith.addf %313, %314 : vector<16x64xf32>
    %316 = arith.mulf %315, %305 : vector<16x64xf32>
    %cst_111 = arith.constant 0.254829586 : f32
    %317 = vector.broadcast %cst_111 : f32 to vector<16x64xf32>
    %318 = arith.addf %316, %317 : vector<16x64xf32>
    %319 = arith.mulf %318, %305 : vector<16x64xf32>
    %cst_112 = arith.constant 0.000000e+00 : f32
    %320 = vector.broadcast %cst_112 : f32 to vector<16x64xf32>
    %321 = arith.subf %320, %299 : vector<16x64xf32>
    %322 = arith.mulf %321, %299 : vector<16x64xf32>
    %323 = math.exp %322 : vector<16x64xf32>
    %324 = arith.mulf %319, %323 : vector<16x64xf32>
    %cst_113 = arith.constant 1.000000e+00 : f32
    %325 = vector.broadcast %cst_113 : f32 to vector<16x64xf32>
    %326 = arith.subf %325, %324 : vector<16x64xf32>
    %327 = arith.mulf %298, %326 : vector<16x64xf32>
    %cst_114 = arith.constant 1.000000e+00 : f32
    %328 = vector.broadcast %cst_114 : f32 to vector<16x64xf32>
    %329 = arith.addf %328, %327 : vector<16x64xf32>
    %330 = arith.mulf %291, %329 : vector<16x64xf32>
    %cst_115 = arith.constant dense<0.000000e+00> : vector<16x32xf32>
    %331 = tpu.matmul %330, %207, %cst_115 {dimension_numbers = #tpu.dot_dimension_numbers<[1], [0], [0], [1], [0, 0, 1, 1], [], []>} : vector<16x64xf32>, vector<64x32xf32>, vector<16x32xf32> -> vector<16x32xf32>
    %c15 = arith.constant 15 : index
    %c0_116 = arith.constant 0 : index
    %332 = vector.load %arg4[%c15, %c0_116] : memref<20x128xf32, #tpu.memory_space<vmem>>, vector<1x32xf32>
    %333 = vector.shape_cast %332 : vector<1x32xf32> to vector<32xf32>
    %334 = vector.shape_cast %333 : vector<32xf32> to vector<1x32xf32>
    %335 = vector.broadcast %334 : vector<1x32xf32> to vector<16x32xf32>
    %336 = arith.addf %331, %335 : vector<16x32xf32>
    %337 = arith.addf %283, %336 : vector<16x32xf32>
    %c16 = arith.constant 16 : index
    %c0_117 = arith.constant 0 : index
    %338 = vector.load %arg4[%c16, %c0_117] : memref<20x128xf32, #tpu.memory_space<vmem>>, vector<1x32xf32>
    %339 = vector.shape_cast %338 : vector<1x32xf32> to vector<32xf32>
    %c17 = arith.constant 17 : index
    %c0_118 = arith.constant 0 : index
    %340 = vector.load %arg4[%c17, %c0_118] : memref<20x128xf32, #tpu.memory_space<vmem>>, vector<1x32xf32>
    %341 = vector.shape_cast %340 : vector<1x32xf32> to vector<32xf32>
    %cst_119 = arith.constant dense<0.000000e+00> : vector<16xf32>
    %342 = vector.multi_reduction <add>, %337, %cst_119 [1] : vector<16x32xf32> to vector<16xf32>
    %343 = vector.shape_cast %342 : vector<16xf32> to vector<16x1xf32>
    %cst_120 = arith.constant 3.200000e+01 : f32
    %344 = vector.broadcast %cst_120 : f32 to vector<16x1xf32>
    %345 = arith.divf %343, %344 : vector<16x1xf32>
    %346 = vector.broadcast %345 : vector<16x1xf32> to vector<16x32xf32>
    %347 = arith.subf %337, %346 : vector<16x32xf32>
    %348 = vector.broadcast %345 : vector<16x1xf32> to vector<16x32xf32>
    %349 = arith.subf %337, %348 : vector<16x32xf32>
    %350 = arith.mulf %347, %349 : vector<16x32xf32>
    %cst_121 = arith.constant dense<0.000000e+00> : vector<16xf32>
    %351 = vector.multi_reduction <add>, %350, %cst_121 [1] : vector<16x32xf32> to vector<16xf32>
    %352 = vector.shape_cast %351 : vector<16xf32> to vector<16x1xf32>
    %cst_122 = arith.constant 3.200000e+01 : f32
    %353 = vector.broadcast %cst_122 : f32 to vector<16x1xf32>
    %354 = arith.divf %352, %353 : vector<16x1xf32>
    %355 = vector.broadcast %345 : vector<16x1xf32> to vector<16x32xf32>
    %356 = arith.subf %337, %355 : vector<16x32xf32>
    %cst_123 = arith.constant 9.99999996E-13 : f32
    %357 = vector.broadcast %cst_123 : f32 to vector<16x1xf32>
    %358 = arith.addf %354, %357 : vector<16x1xf32>
    %359 = math.rsqrt %358 : vector<16x1xf32>
    %360 = vector.broadcast %359 : vector<16x1xf32> to vector<16x32xf32>
    %361 = arith.mulf %356, %360 : vector<16x32xf32>
    %362 = vector.shape_cast %339 : vector<32xf32> to vector<1x32xf32>
    %363 = vector.broadcast %362 : vector<1x32xf32> to vector<16x32xf32>
    %364 = arith.mulf %361, %363 : vector<16x32xf32>
    %365 = vector.shape_cast %341 : vector<32xf32> to vector<1x32xf32>
    %366 = vector.broadcast %365 : vector<1x32xf32> to vector<16x32xf32>
    %367 = arith.addf %364, %366 : vector<16x32xf32>
    %c2_124 = arith.constant 2 : index
    %c0_125 = arith.constant 0 : index
    %c0_126 = arith.constant 0 : index
    %368 = vector.load %arg2[%c2_124, %c0_125, %c0_126] : memref<3x32x384xf32, #tpu.memory_space<vmem>>, vector<1x32x32xf32>
    %369 = vector.shape_cast %368 : vector<1x32x32xf32> to vector<32x32xf32>
    %c2_127 = arith.constant 2 : index
    %c0_128 = arith.constant 0 : index
    %c128_129 = arith.constant 128 : index
    %370 = vector.load %arg2[%c2_127, %c0_128, %c128_129] : memref<3x32x384xf32, #tpu.memory_space<vmem>>, vector<1x32x128xf32>
    %371 = vector.shape_cast %370 : vector<1x32x128xf32> to vector<32x128xf32>
    %cst_130 = arith.constant dense<0.000000e+00> : vector<16x32xf32>
    %372 = tpu.matmul %367, %369, %cst_130 {dimension_numbers = #tpu.dot_dimension_numbers<[1], [0], [0], [1], [0, 0, 1, 1], [], []>} : vector<16x32xf32>, vector<32x32xf32>, vector<16x32xf32> -> vector<16x32xf32>
    %c18 = arith.constant 18 : index
    %c0_131 = arith.constant 0 : index
    %373 = vector.load %arg4[%c18, %c0_131] : memref<20x128xf32, #tpu.memory_space<vmem>>, vector<1x32xf32>
    %374 = vector.shape_cast %373 : vector<1x32xf32> to vector<32xf32>
    %375 = vector.shape_cast %374 : vector<32xf32> to vector<1x32xf32>
    %376 = vector.broadcast %375 : vector<1x32xf32> to vector<16x32xf32>
    %377 = arith.addf %372, %376 : vector<16x32xf32>
    %378 = math.tanh %377 : vector<16x32xf32>
    %cst_132 = arith.constant dense<0.000000e+00> : vector<16x128xf32>
    %379 = tpu.matmul %378, %371, %cst_132 {dimension_numbers = #tpu.dot_dimension_numbers<[1], [0], [0], [1], [0, 0, 1, 1], [], []>} : vector<16x32xf32>, vector<32x128xf32>, vector<16x128xf32> -> vector<16x128xf32>
    %c19 = arith.constant 19 : index
    %c0_133 = arith.constant 0 : index
    %380 = vector.load %arg4[%c19, %c0_133] : memref<20x128xf32, #tpu.memory_space<vmem>>, vector<1x128xf32>
    %381 = vector.shape_cast %380 : vector<1x128xf32> to vector<128xf32>
    %382 = vector.shape_cast %381 : vector<128xf32> to vector<1x128xf32>
    %383 = vector.broadcast %382 : vector<1x128xf32> to vector<16x128xf32>
    %384 = arith.addf %379, %383 : vector<16x128xf32>
    %385 = arith.negf %384 : vector<16x128xf32>
    %386 = math.exp %385 : vector<16x128xf32>
    %cst_134 = arith.constant 1.000000e+00 : f32
    %387 = vector.broadcast %cst_134 : f32 to vector<16x128xf32>
    %388 = arith.addf %387, %386 : vector<16x128xf32>
    %389 = arith.divf %387, %388 : vector<16x128xf32>
    %c0_135 = arith.constant 0 : index
    %c0_136 = arith.constant 0 : index
    %390 = vector.load %arg5[%c0_135, %c0_136] : memref<16x128xf32, #tpu.memory_space<vmem>>, vector<16x128xf32>
    tpu.vector_store %arg5[%c0_135, %c0_136], %389 {strides = array<i32>} : memref<16x128xf32, #tpu.memory_space<vmem>>, vector<16x128xf32>,
    return
  }
}

</mosaic_0001>

<llo_original>
// kernel: n2sm2_forward.1
$region0: #{n2sm2_forward.1}
  #allocation0 [shape = 'u32[]', space=smem, size = 0x4, offset = 0x4, fixed_abs, tag = 'smem constant byte address 0x4 - core index']
  #allocation1 [shape = 'u32[144,128]{1,0:T(1,128)}', space=vmem, size = 0x12000, scoped, tag = 'internal scratch']
  %s0 = inlined_call_operand.vmem [shape: f32[16,32], index: 0, kind: input, shape index: {}]
  %s1 = inlined_call_operand.vmem [shape: f32[16,16], index: 1, kind: input, shape index: {}]
  %s2 = inlined_call_operand.vmem [shape: f32[3,32,384], index: 2, kind: input, shape index: {}]
  %s3 = inlined_call_operand.vmem [shape: f32[2,64,32], index: 3, kind: input, shape index: {}]
  %s4 = inlined_call_operand.vmem [shape: f32[20,128], index: 4, kind: input, shape index: {}]
  %s5 = inlined_call_operand.vmem [shape: f32[16,128], index: 5, kind: output, shape index: {}]
  %s6 = sld [smem:[#allocation0]]
  $region30: #{n2sm2_forward.1} parent=0
    _
  %s8 = ssub.s32 1, %s6
  %s9 = scalar_select 0, %s8, %s6
  // Predicated region
  $region2: #{n2sm2_forward.1} parent=0 // pred_check
    _
  $region3: #{n2sm2_forward.1} parent=0 // pred_check_branch
    %11 = sbr.rel (0) target = $region5
  $region4: #{n2sm2_forward.1} parent=0 // pred_region
    _
  $region5: #{n2sm2_forward.1} parent=0 // pred_fallthru
    _
  // Predicated region
  $region6: #{n2sm2_forward.1} parent=0 // pred_check
    _
  $region7: #{n2sm2_forward.1} parent=0 // pred_check_branch
    %13 = sbr.rel (0) target = $region9
  $region8: #{n2sm2_forward.1} parent=0 // pred_region
    _
  $region9: #{n2sm2_forward.1} parent=0 // pred_fallthru
    _
  // Predicated region
  $region10: #{n2sm2_forward.1} parent=0 // pred_check
    _
  $region11: #{n2sm2_forward.1} parent=0 // pred_check_branch
    %15 = sbr.rel (0) target = $region13
  $region12: #{n2sm2_forward.1} parent=0 // pred_region
    _
  $region13: #{n2sm2_forward.1} parent=0 // pred_fallthru
    _
  // Predicated region
  $region14: #{n2sm2_forward.1} parent=0 // pred_check
    _
  $region15: #{n2sm2_forward.1} parent=0 // pred_check_branch
    %17 = sbr.rel (0) target = $region17
  $region16: #{n2sm2_forward.1} parent=0 // pred_region
    _
  $region17: #{n2sm2_forward.1} parent=0 // pred_fallthru
    _
  // Predicated region
  $region18: #{n2sm2_forward.1} parent=0 // pred_check
    _
  $region19: #{n2sm2_forward.1} parent=0 // pred_check_branch
    %19 = sbr.rel (0) target = $region21
  $region20: #{n2sm2_forward.1} parent=0 // pred_region
    _
  $region21: #{n2sm2_forward.1} parent=0 // pred_fallthru
    _
  %v20 = vld [vmem:[%s1] sm:$0xff]
  %v21 = vld [vmem:[%s1 + $0x8] sm:$0xff]
  %v22 = vld [vmem:[%s0] sm:$0xff]
  %v23 = vld [vmem:[%s0 + $0x8] sm:$0xff]
  %v24 = vld [vmem:[%s4] sm:$0x1]
  %v25 = vld [vmem:[%s4 + $0x1] sm:$0x1]
  %vm26 = vcmask 261120
  %v27 = vsel %vm26, %v22, 0.0
  %28 = vadd.xlane.f32.xlu0 %v27
  %v29 = vpop.xlane.xlu0 %28
  %v30 = vsel %vm26, %v23, 0.0
  %31 = vadd.xlane.f32.xlu0 %v30
  %v32 = vpop.xlane.xlu0 %31
  %v33 = vrcp.pop 32.0
  %v34 = vmul.f32 %v29, %v33
  %v35 = vmul.f32 %v32, %v33
  %v36 = vsub.f32 %v22, %v34
  %v37 = vsub.f32 %v23, %v35
  %v38 = vmul.f32 %v36, %v36
  %v39 = vmul.f32 %v37, %v37
  %v40 = vsel %vm26, %v38, 0.0
  %41 = vadd.xlane.f32.xlu0 %v40
  %v42 = vpop.xlane.xlu0 %41
  %v43 = vsel %vm26, %v39, 0.0
  %44 = vadd.xlane.f32.xlu0 %v43
  %v45 = vpop.xlane.xlu0 %44
  %v46 = vmul.f32 %v42, %v33
  %v47 = vmul.f32 %v45, %v33
  %v48 = vadd.f32 %v46, 1e-12
  %v49 = vadd.f32 %v47, 1e-12
  %v50 = vrsqrt.pop %v48
  %v51 = vrsqrt.pop %v49
  %v52 = vmul.f32 %v36, %v50
  %v53 = vmul.f32 %v37, %v51
  %v54 = vlaneseq
  %v55 = vshrl.u32 %v54, 7
  %v56 = vsub.s32 0, %v55
  %v57 = vrot.slane %v24, %v56
  %v58 = vmul.f32 %v52, %v57
  %v59 = vmul.f32 %v53, %v57
  %v60 = vlaneseq
  %v61 = vshrl.u32 %v60, 7
  %v62 = vsub.s32 0, %v61
  %v63 = vrot.slane %v25, %v62
  %v64 = vadd.f32 %v58, %v63
  %v65 = vadd.f32 %v59, %v63
  %v66 = vld [vmem:[%s2] sm:$0xff]
  %v67 = vld [vmem:[%s2 + $0x18] sm:$0xff]
  %v68 = vld [vmem:[%s2 + $0x30] sm:$0xff]
  %v69 = vld [vmem:[%s2 + $0x48] sm:$0xff]
  %v70 = vld [vmem:[%s2 + $0x8] sm:$0xff]
  %v71 = vld [vmem:[%s2 + $0x20] sm:$0xff]
  %v72 = vld [vmem:[%s2 + $0x38] sm:$0xff]
  %v73 = vld [vmem:[%s2 + $0x50] sm:$0xff]
  %v74 = vld [vmem:[%s2 + $0x10] sm:$0xff]
  %v75 = vld [vmem:[%s2 + $0x28] sm:$0xff]
  %v76 = vld [vmem:[%s2 + $0x40] sm:$0xff]
  %v77 = vld [vmem:[%s2 + $0x58] sm:$0xff]
  %v78 = vld [vmem:[%s3] sm:$0xff]
  %v79 = vld [vmem:[%s3 + $0x8] sm:$0xff]
  %v80 = vld [vmem:[%s3 + $0x10] sm:$0xff]
  %v81 = vld [vmem:[%s3 + $0x18] sm:$0xff]
  %v82 = vld [vmem:[%s3 + $0x20] sm:$0xff]
  %v83 = vld [vmem:[%s3 + $0x28] sm:$0xff]
  %v84 = vld [vmem:[%s3 + $0x30] sm:$0xff]
  %v85 = vld [vmem:[%s3 + $0x38] sm:$0xff]
  %v86 = vld [vmem:[%s4 + $0x2] sm:$0x1]
  %v87 = vlaneseq
  %v88 = vshrl.u32 %v87, 7
  %v89 = vsub.s32 0, %v88
  %v90 = vrot.slane %v86, %v89
  %v92 = vsel %vm26, %v64, 0
  %v95 = vsel %vm26, %v65, 0
  %97 = vmatprep.subr.mxu0 0.0
  %98 = vmatpush1.msra.mxu0 %v66
  %99 = vmatprep.subr.mxu0 0.0
  %100 = vmatpush1.msra.mxu0 %v67
  %101 = vmatprep.subr.mxu0 0.0
  %102 = vmatpush1.msra.mxu0 %v68
  %103 = vmatprep.subr.mxu0 0.0
  %104 = vmatpush1.msra.mxu0 %v69
  %105 = vmatprep.subr.mxu0 0.0
  %106 = vmatpush1.msra.mxu0 0.0
  %107 = vmatprep.subr.mxu0 0.0
  %108 = vmatpush1.msra.mxu0 0.0
  %109 = vmatprep.subr.mxu0 0.0
  %110 = vmatpush1.msra.mxu0 0.0
  %111 = vmatprep.subr.mxu0 0.0
  %112 = vmatpush1.msra.mxu0 0.0
  %113 = vmatprep.subr.mxu0 0.0
  %114 = vmatpush1.msra.mxu0 0.0
  %115 = vmatprep.subr.mxu0 0.0
  %116 = vmatpush1.msra.mxu0 0.0
  %117 = vmatprep.subr.mxu0 0.0
  %118 = vmatpush1.msra.mxu0 0.0
  %119 = vmatprep.subr.mxu0 0.0
  %120 = vmatpush1.msra.mxu0 0.0
  %121 = vmatprep.subr.mxu0 0.0
  %122 = vmatpush1.msra.mxu0 0.0
  %123 = vmatprep.subr.mxu0 0.0
  %124 = vmatpush1.msra.mxu0 0.0
  %125 = vmatprep.subr.mxu0 0.0
  %126 = vmatpush1.msra.mxu0 0.0
  %127 = vmatprep.subr.mxu0 0.0
  %128 = vmatpush1.msra.mxu0 0.0
  %129 = vmatprep.subr.mxu0 0.0
  %130 = vmatpush1.msra.mxu0 0.0
  %131 = vmatprep.subr.mxu0 0.0
  %132 = vmatpush1.msra.mxu0 0.0
  %133 = vmatprep.subr.mxu0 0.0
  %134 = vmatpush1.msra.mxu0 0.0
  %135 = vmatprep.subr.mxu0 0.0
  %136 = vmatpush1.msra.mxu0 0.0
  %137 = vmatprep.subr.mxu0 0.0
  %138 = vmatpush1.msra.mxu0 0.0
  %139 = vmatprep.subr.mxu0 0.0
  %140 = vmatpush1.msra.mxu0 0.0
  %141 = vmatprep.subr.mxu0 0.0
  %142 = vmatpush1.msra.mxu0 0.0
  %143 = vmatprep.subr.mxu0 0.0
  %144 = vmatpush1.msra.mxu0 0.0
  %145 = vmatprep.subr.mxu0 0.0
  %146 = vmatpush1.msra.mxu0 0.0
  %147 = vmatprep.subr.mxu0 0.0
  %148 = vmatpush1.msra.mxu0 0.0
  %149 = vmatprep.subr.mxu0 0.0
  %150 = vmatpush1.msra.mxu0 0.0
  %151 = vmatprep.subr.mxu0 0.0
  %152 = vmatpush1.msra.mxu0 0.0
  %153 = vmatprep.subr.mxu0 0.0
  %154 = vmatpush1.msra.mxu0 0.0
  %155 = vmatprep.subr.mxu0 0.0
  %156 = vmatpush1.msra.mxu0 0.0
  %157 = vmatprep.subr.mxu0 0.0
  %158 = vmatpush1.msra.mxu0 0.0
  %159 = vmatprep.subr.mxu0 0.0
  %160 = vmatpush1.msra.mxu0 0.0
  %161 = vmatprep.mubr.f32.mxu0 0.0
  %162 = vmatmul.mubr.f32.gmra.mrb[0].mxu0 %v92
  %v163 = vpop.f32.mrb[0].mxu0
  %v164 = vadd.f32 %v90, %v163
  %v165 = vpop.f32.mrb[0].mxu0
  %166 = vmatprep.mubr.f32.mxu0 0.0
  %167 = vmatmul.mubr.f32.gmra.mrb[0].mxu0 %v95
  %v168 = vpop.f32.mrb[0].mxu0
  %v169 = vadd.f32 %v90, %v168
  %v170 = vpop.f32.mrb[0].mxu0
  %171 = vdwg.mxu0
  %174 = vrot.lane.b32.xlu0 %v164, 96
  %v175 = vpop.permute.xlu0 %174
  %176 = vrot.lane.b32.xlu0 %v169, 96
  %v177 = vpop.permute.xlu0 %176
  %vm178 = vcmask 130048
  %v179 = vsel %vm178, %v164, 0
  %v181 = vsel %vm178, %v169, 0
  %v183 = vsel %vm178, %v175, 0
  %v185 = vsel %vm178, %v177, 0
  %187 = vmatprep.subr.mxu0 0.0
  %188 = vmatpush1.xpose.msra.mxu0 %v183
  %189 = vmatprep.subr.mxu0 0.0
  %190 = vmatpush1.xpose.msra.mxu0 %v185
  %191 = vmatprep.subr.mxu0 0.0
  %192 = vmatpush1.xpose.msra.mxu0 0.0
  %193 = vmatprep.subr.mxu0 0.0
  %194 = vmatpush1.xpose.msra.mxu0 0.0
  %195 = vmatprep.subr.mxu0 0.0
  %196 = vmatpush1.xpose.msra.mxu0 0.0
  %197 = vmatprep.subr.mxu0 0.0
  %198 = vmatpush1.xpose.msra.mxu0 0.0
  %199 = vmatprep.subr.mxu0 0.0
  %200 = vmatpush1.xpose.msra.mxu0 0.0
  %201 = vmatprep.subr.mxu0 0.0
  %202 = vmatpush1.xpose.msra.mxu0 0.0
  %203 = vmatprep.subr.mxu0 0.0
  %204 = vmatpush1.xpose.msra.mxu0 0.0
  %205 = vmatprep.subr.mxu0 0.0
  %206 = vmatpush1.xpose.msra.mxu0 0.0
  %207 = vmatprep.subr.mxu0 0.0
  %208 = vmatpush1.xpose.msra.mxu0 0.0
  %209 = vmatprep.subr.mxu0 0.0
  %210 = vmatpush1.xpose.msra.mxu0 0.0
  %211 = vmatprep.subr.mxu0 0.0
  %212 = vmatpush1.xpose.msra.mxu0 0.0
  %213 = vmatprep.subr.mxu0 0.0
  %214 = vmatpush1.xpose.msra.mxu0 0.0
  %215 = vmatprep.subr.mxu0 0.0
  %216 = vmatpush1.xpose.msra.mxu0 0.0
  %217 = vmatprep.subr.mxu0 0.0
  %218 = vmatpush1.xpose.msra.mxu0 0.0
  %219 = vmatprep.subr.mxu0 0.0
  %220 = vmatpush1.xpose.msra.mxu0 0.0
  %221 = vmatprep.subr.mxu0 0.0
  %222 = vmatpush1.xpose.msra.mxu0 0.0
  %223 = vmatprep.subr.mxu0 0.0
  %224 = vmatpush1.xpose.msra.mxu0 0.0
  %225 = vmatprep.subr.mxu0 0.0
  %226 = vmatpush1.xpose.msra.mxu0 0.0
  %227 = vmatprep.subr.mxu0 0.0
  %228 = vmatpush1.xpose.msra.mxu0 0.0
  %229 = vmatprep.subr.mxu0 0.0
  %230 = vmatpush1.xpose.msra.mxu0 0.0
  %231 = vmatprep.subr.mxu0 0.0
  %232 = vmatpush1.xpose.msra.mxu0 0.0
  %233 = vmatprep.subr.mxu0 0.0
  %234 = vmatpush1.xpose.msra.mxu0 0.0
  %235 = vmatprep.subr.mxu0 0.0
  %236 = vmatpush1.xpose.msra.mxu0 0.0
  %237 = vmatprep.subr.mxu0 0.0
  %238 = vmatpush1.xpose.msra.mxu0 0.0
  %239 = vmatprep.subr.mxu0 0.0
  %240 = vmatpush1.xpose.msra.mxu0 0.0
  %241 = vmatprep.subr.mxu0 0.0
  %242 = vmatpush1.xpose.msra.mxu0 0.0
  %243 = vmatprep.subr.mxu0 0.0
  %244 = vmatpush1.xpose.msra.mxu0 0.0
  %245 = vmatprep.subr.mxu0 0.0
  %246 = vmatpush1.xpose.msra.mxu0 0.0
  %247 = vmatprep.subr.mxu0 0.0
  %248 = vmatpush1.xpose.msra.mxu0 0.0
  %249 = vmatprep.subr.mxu0 0.0
  %250 = vmatpush1.xpose.msra.mxu0 0.0
  %251 = vmatprep.mubr.f32.mxu0 0.0
  %252 = vmatmul.mubr.f32.gmra.mrb[0].mxu0 %v179
  %v253 = vpop.f32.mrb[0].mxu0
  %v254 = vadd.f32 %v20, %v253
  %v255 = vpop.f32.mrb[0].mxu0
  %256 = vmatprep.mubr.f32.mxu0 0.0
  %257 = vmatmul.mubr.f32.gmra.mrb[0].mxu0 %v181
  %v258 = vpop.f32.mrb[0].mxu0
  %v259 = vadd.f32 %v21, %v258
  %v260 = vpop.f32.mrb[0].mxu0
  %261 = vdwg.mxu0
  %v262 = vsel %vm178, %v254, -inf
  %263 = vmax.xlane.f32.xlu0 %v262
  %v264 = vpop.xlane.xlu0 %263
  %v265 = vsel %vm178, %v259, -inf
  %266 = vmax.xlane.f32.xlu0 %v265
  %v267 = vpop.xlane.xlu0 %266
  %v268 = vsub.f32 %v254, %v264
  %v269 = vsub.f32 %v259, %v267
  %v270 = vmul.f32 %v268, 1.442695
  %v271 = vpow.pop %v270
  %v272 = vmul.f32 %v269, 1.442695
  %v273 = vpow.pop %v272
  %v274 = vsel %vm178, %v271, 0.0
  %275 = vadd.xlane.f32.xlu0 %v274
  %v276 = vpop.xlane.xlu0 %275
  %v277 = vsel %vm178, %v273, 0.0
  %278 = vadd.xlane.f32.xlu0 %v277
  %v279 = vpop.xlane.xlu0 %278
  %v280 = vrcp.pop %v276
  %v281 = vrcp.pop %v279
  %v282 = vmul.f32 %v271, %v280
  %v283 = vmul.f32 %v273, %v281
  %284 = vrot.lane.b32.xlu0 %v164, 64
  %v285 = vpop.permute.xlu0 %284
  %286 = vrot.lane.b32.xlu0 %v169, 64
  %v287 = vpop.permute.xlu0 %286
  %v291 = vsel %vm178, %v282, 0
  %v294 = vsel %vm178, %v283, 0
  %296 = vmatprep.subr.mxu0 0.0
  %297 = vmatpush1.msra.mxu0 %v285
  %298 = vmatprep.subr.mxu0 0.0
  %299 = vmatpush1.msra.mxu0 %v287
  %300 = vmatprep.subr.mxu0 0.0
  %301 = vmatpush1.msra.mxu0 0.0
  %302 = vmatprep.subr.mxu0 0.0
  %303 = vmatpush1.msra.mxu0 0.0
  %304 = vmatprep.subr.mxu0 0.0
  %305 = vmatpush1.msra.mxu0 0.0
  %306 = vmatprep.subr.mxu0 0.0
  %307 = vmatpush1.msra.mxu0 0.0
  %308 = vmatprep.subr.mxu0 0.0
  %309 = vmatpush1.msra.mxu0 0.0
  %310 = vmatprep.subr.mxu0 0.0
  %311 = vmatpush1.msra.mxu0 0.0
  %312 = vmatprep.subr.mxu0 0.0
  %313 = vmatpush1.msra.mxu0 0.0
  %314 = vmatprep.subr.mxu0 0.0
  %315 = vmatpush1.msra.mxu0 0.0
  %316 = vmatprep.subr.mxu0 0.0
  %317 = vmatpush1.msra.mxu0 0.0
  %318 = vmatprep.subr.mxu0 0.0
  %319 = vmatpush1.msra.mxu0 0.0
  %320 = vmatprep.subr.mxu0 0.0
  %321 = vmatpush1.msra.mxu0 0.0
  %322 = vmatprep.subr.mxu0 0.0
  %323 = vmatpush1.msra.mxu0 0.0
  %324 = vmatprep.subr.mxu0 0.0
  %325 = vmatpush1.msra.mxu0 0.0
  %326 = vmatprep.subr.mxu0 0.0
  %327 = vmatpush1.msra.mxu0 0.0
  %328 = vmatprep.subr.mxu0 0.0
  %329 = vmatpush1.msra.mxu0 0.0
  %330 = vmatprep.subr.mxu0 0.0
  %331 = vmatpush1.msra.mxu0 0.0
  %332 = vmatprep.subr.mxu0 0.0
  %333 = vmatpush1.msra.mxu0 0.0
  %334 = vmatprep.subr.mxu0 0.0
  %335 = vmatpush1.msra.mxu0 0.0
  %336 = vmatprep.subr.mxu0 0.0
  %337 = vmatpush1.msra.mxu0 0.0
  %338 = vmatprep.subr.mxu0 0.0
  %339 = vmatpush1.msra.mxu0 0.0
  %340 = vmatprep.subr.mxu0 0.0
  %341 = vmatpush1.msra.mxu0 0.0
  %342 = vmatprep.subr.mxu0 0.0
  %343 = vmatpush1.msra.mxu0 0.0
  %344 = vmatprep.subr.mxu0 0.0
  %345 = vmatpush1.msra.mxu0 0.0
  %346 = vmatprep.subr.mxu0 0.0
  %347 = vmatpush1.msra.mxu0 0.0
  %348 = vmatprep.subr.mxu0 0.0
  %349 = vmatpush1.msra.mxu0 0.0
  %350 = vmatprep.subr.mxu0 0.0
  %351 = vmatpush1.msra.mxu0 0.0
  %352 = vmatprep.subr.mxu0 0.0
  %353 = vmatpush1.msra.mxu0 0.0
  %354 = vmatprep.subr.mxu0 0.0
  %355 = vmatpush1.msra.mxu0 0.0
  %356 = vmatprep.subr.mxu0 0.0
  %357 = vmatpush1.msra.mxu0 0.0
  %358 = vmatprep.subr.mxu0 0.0
  %359 = vmatpush1.msra.mxu0 0.0
  %360 = vmatprep.mubr.f32.mxu0 0.0
  %361 = vmatmul.mubr.f32.gmra.mrb[0].mxu0 %v291
  %v362 = vpop.f32.mrb[0].mxu0
  %v363 = vadd.f32 0.0, %v362
  %v364 = vpop.f32.mrb[0].mxu0
  %365 = vmatprep.mubr.f32.mxu0 0.0
  %366 = vmatmul.mubr.f32.gmra.mrb[0].mxu0 %v294
  %v367 = vpop.f32.mrb[0].mxu0
  %v368 = vadd.f32 0.0, %v367
  %v369 = vpop.f32.mrb[0].mxu0
  %370 = vdwg.mxu0
  %371 = vrot.lane.b32.xlu0 %v164, 112
  %v372 = vpop.permute.xlu0 %371
  %373 = vrot.lane.b32.xlu0 %v169, 112
  %v374 = vpop.permute.xlu0 %373
  %375 = vrot.lane.b32.xlu0 %v164, 80
  %v376 = vpop.permute.xlu0 %375
  %377 = vrot.lane.b32.xlu0 %v169, 80
  %v378 = vpop.permute.xlu0 %377
  %v379 = vsel %vm178, %v372, 0
  %v381 = vsel %vm178, %v374, 0
  %v383 = vsel %vm178, %v376, 0
  %v385 = vsel %vm178, %v378, 0
  %387 = vmatprep.subr.mxu0 0.0
  %388 = vmatpush1.xpose.msra.mxu0 %v383
  %389 = vmatprep.subr.mxu0 0.0
  %390 = vmatpush1.xpose.msra.mxu0 %v385
  %391 = vmatprep.subr.mxu0 0.0
  %392 = vmatpush1.xpose.msra.mxu0 0.0
  %393 = vmatprep.subr.mxu0 0.0
  %394 = vmatpush1.xpose.msra.mxu0 0.0
  %395 = vmatprep.subr.mxu0 0.0
  %396 = vmatpush1.xpose.msra.mxu0 0.0
  %397 = vmatprep.subr.mxu0 0.0
  %398 = vmatpush1.xpose.msra.mxu0 0.0
  %399 = vmatprep.subr.mxu0 0.0
  %400 = vmatpush1.xpose.msra.mxu0 0.0
  %401 = vmatprep.subr.mxu0 0.0
  %402 = vmatpush1.xpose.msra.mxu0 0.0
  %403 = vmatprep.subr.mxu0 0.0
  %404 = vmatpush1.xpose.msra.mxu0 0.0
  %405 = vmatprep.subr.mxu0 0.0
  %406 = vmatpush1.xpose.msra.mxu0 0.0
  %407 = vmatprep.subr.mxu0 0.0
  %408 = vmatpush1.xpose.msra.mxu0 0.0
  %409 = vmatprep.subr.mxu0 0.0
  %410 = vmatpush1.xpose.msra.mxu0 0.0
  %411 = vmatprep.subr.mxu0 0.0
  %412 = vmatpush1.xpose.msra.mxu0 0.0
  %413 = vmatprep.subr.mxu0 0.0
  %414 = vmatpush1.xpose.msra.mxu0 0.0
  %415 = vmatprep.subr.mxu0 0.0
  %416 = vmatpush1.xpose.msra.mxu0 0.0
  %417 = vmatprep.subr.mxu0 0.0
  %418 = vmatpush1.xpose.msra.mxu0 0.0
  %419 = vmatprep.subr.mxu0 0.0
  %420 = vmatpush1.xpose.msra.mxu0 0.0
  %421 = vmatprep.subr.mxu0 0.0
  %422 = vmatpush1.xpose.msra.mxu0 0.0
  %423 = vmatprep.subr.mxu0 0.0
  %424 = vmatpush1.xpose.msra.mxu0 0.0
  %425 = vmatprep.subr.mxu0 0.0
  %426 = vmatpush1.xpose.msra.mxu0 0.0
  %427 = vmatprep.subr.mxu0 0.0
  %428 = vmatpush1.xpose.msra.mxu0 0.0
  %429 = vmatprep.subr.mxu0 0.0
  %430 = vmatpush1.xpose.msra.mxu0 0.0
  %431 = vmatprep.subr.mxu0 0.0
  %432 = vmatpush1.xpose.msra.mxu0 0.0
  %433 = vmatprep.subr.mxu0 0.0
  %434 = vmatpush1.xpose.msra.mxu0 0.0
  %435 = vmatprep.subr.mxu0 0.0
  %436 = vmatpush1.xpose.msra.mxu0 0.0
  %437 = vmatprep.subr.mxu0 0.0
  %438 = vmatpush1.xpose.msra.mxu0 0.0
  %439 = vmatprep.subr.mxu0 0.0
  %440 = vmatpush1.xpose.msra.mxu0 0.0
  %441 = vmatprep.subr.mxu0 0.0
  %442 = vmatpush1.xpose.msra.mxu0 0.0
  %443 = vmatprep.subr.mxu0 0.0
  %444 = vmatpush1.xpose.msra.mxu0 0.0
  %445 = vmatprep.subr.mxu0 0.0
  %446 = vmatpush1.xpose.msra.mxu0 0.0
  %447 = vmatprep.subr.mxu0 0.0
  %448 = vmatpush1.xpose.msra.mxu0 0.0
  %449 = vmatprep.subr.mxu0 0.0
  %450 = vmatpush1.xpose.msra.mxu0 0.0
  %451 = vmatprep.mubr.f32.mxu0 0.0
  %452 = vmatmul.mubr.f32.gmra.mrb[0].mxu0 %v379
  %v453 = vpop.f32.mrb[0].mxu0
  %v454 = vadd.f32 %v20, %v453
  %v455 = vpop.f32.mrb[0].mxu0
  %456 = vmatprep.mubr.f32.mxu0 0.0
  %457 = vmatmul.mubr.f32.gmra.mrb[0].mxu0 %v381
  %v458 = vpop.f32.mrb[0].mxu0
  %v459 = vadd.f32 %v21, %v458
  %v460 = vpop.f32.mrb[0].mxu0
  %461 = vdwg.mxu0
  %v462 = vsel %vm178, %v454, -inf
  %463 = vmax.xlane.f32.xlu0 %v462
  %v464 = vpop.xlane.xlu0 %463
  %v465 = vsel %vm178, %v459, -inf
  %466 = vmax.xlane.f32.xlu0 %v465
  %v467 = vpop.xlane.xlu0 %466
  %v468 = vsub.f32 %v454, %v464
  %v469 = vsub.f32 %v459, %v467
  %v470 = vmul.f32 %v468, 1.442695
  %v471 = vpow.pop %v470
  %v472 = vmul.f32 %v469, 1.442695
  %v473 = vpow.pop %v472
  %v474 = vsel %vm178, %v471, 0.0
  %475 = vadd.xlane.f32.xlu0 %v474
  %v476 = vpop.xlane.xlu0 %475
  %v477 = vsel %vm178, %v473, 0.0
  %478 = vadd.xlane.f32.xlu0 %v477
  %v479 = vpop.xlane.xlu0 %478
  %v480 = vrcp.pop %v476
  %v481 = vrcp.pop %v479
  %v482 = vmul.f32 %v471, %v480
  %v483 = vmul.f32 %v473, %v481
  %484 = vrot.lane.b32.xlu0 %v164, 48
  %v485 = vpop.permute.xlu0 %484
  %486 = vrot.lane.b32.xlu0 %v169, 48
  %v487 = vpop.permute.xlu0 %486
  %v491 = vsel %vm178, %v482, 0
  %v494 = vsel %vm178, %v483, 0
  %496 = vmatprep.subr.mxu0 0.0
  %497 = vmatpush1.msra.mxu0 %v485
  %498 = vmatprep.subr.mxu0 0.0
  %499 = vmatpush1.msra.mxu0 %v487
  %500 = vmatprep.subr.mxu0 0.0
  %501 = vmatpush1.msra.mxu0 0.0
  %502 = vmatprep.subr.mxu0 0.0
  %503 = vmatpush1.msra.mxu0 0.0
  %504 = vmatprep.subr.mxu0 0.0
  %505 = vmatpush1.msra.mxu0 0.0
  %506 = vmatprep.subr.mxu0 0.0
  %507 = vmatpush1.msra.mxu0 0.0
  %508 = vmatprep.subr.mxu0 0.0
  %509 = vmatpush1.msra.mxu0 0.0
  %510 = vmatprep.subr.mxu0 0.0
  %511 = vmatpush1.msra.mxu0 0.0
  %512 = vmatprep.subr.mxu0 0.0
  %513 = vmatpush1.msra.mxu0 0.0
  %514 = vmatprep.subr.mxu0 0.0
  %515 = vmatpush1.msra.mxu0 0.0
  %516 = vmatprep.subr.mxu0 0.0
  %517 = vmatpush1.msra.mxu0 0.0
  %518 = vmatprep.subr.mxu0 0.0
  %519 = vmatpush1.msra.mxu0 0.0
  %520 = vmatprep.subr.mxu0 0.0
  %521 = vmatpush1.msra.mxu0 0.0
  %522 = vmatprep.subr.mxu0 0.0
  %523 = vmatpush1.msra.mxu0 0.0
  %524 = vmatprep.subr.mxu0 0.0
  %525 = vmatpush1.msra.mxu0 0.0
  %526 = vmatprep.subr.mxu0 0.0
  %527 = vmatpush1.msra.mxu0 0.0
  %528 = vmatprep.subr.mxu0 0.0
  %529 = vmatpush1.msra.mxu0 0.0
  %530 = vmatprep.subr.mxu0 0.0
  %531 = vmatpush1.msra.mxu0 0.0
  %532 = vmatprep.subr.mxu0 0.0
  %533 = vmatpush1.msra.mxu0 0.0
  %534 = vmatprep.subr.mxu0 0.0
  %535 = vmatpush1.msra.mxu0 0.0
  %536 = vmatprep.subr.mxu0 0.0
  %537 = vmatpush1.msra.mxu0 0.0
  %538 = vmatprep.subr.mxu0 0.0
  %539 = vmatpush1.msra.mxu0 0.0
  %540 = vmatprep.subr.mxu0 0.0
  %541 = vmatpush1.msra.mxu0 0.0
  %542 = vmatprep.subr.mxu0 0.0
  %543 = vmatpush1.msra.mxu0 0.0
  %544 = vmatprep.subr.mxu0 0.0
  %545 = vmatpush1.msra.mxu0 0.0
  %546 = vmatprep.subr.mxu0 0.0
  %547 = vmatpush1.msra.mxu0 0.0
  %548 = vmatprep.subr.mxu0 0.0
  %549 = vmatpush1.msra.mxu0 0.0
  %550 = vmatprep.subr.mxu0 0.0
  %551 = vmatpush1.msra.mxu0 0.0
  %552 = vmatprep.subr.mxu0 0.0
  %553 = vmatpush1.msra.mxu0 0.0
  %554 = vmatprep.subr.mxu0 0.0
  %555 = vmatpush1.msra.mxu0 0.0
  %556 = vmatprep.subr.mxu0 0.0
  %557 = vmatpush1.msra.mxu0 0.0
  %558 = vmatprep.subr.mxu0 0.0
  %559 = vmatpush1.msra.mxu0 0.0
  %560 = vmatprep.mubr.f32.mxu0 0.0
  %561 = vmatmul.mubr.f32.gmra.mrb[0].mxu0 %v491
  %v562 = vpop.f32.mrb[0].mxu0
  %v563 = vadd.f32 0.0, %v562
  %v564 = vpop.f32.mrb[0].mxu0
  %565 = vmatprep.mubr.f32.mxu0 0.0
  %566 = vmatmul.mubr.f32.gmra.mrb[0].mxu0 %v494
  %v567 = vpop.f32.mrb[0].mxu0
  %v568 = vadd.f32 0.0, %v567
  %v569 = vpop.f32.mrb[0].mxu0
  %570 = vdwg.mxu0
  %573 = vrot.lane.b32.xlu0 %v563, 16
  %v574 = vpop.permute.xlu0 %573
  %575 = vrot.lane.b32.xlu0 %v568, 16
  %v576 = vpop.permute.xlu0 %575
  %v579 = vsel %vm178, %v363, %v574
  %v580 = vsel %vm178, %v368, %v576
  %v581 = vld [vmem:[%s4 + $0x3] sm:$0x1]
  %v582 = vlaneseq
  %v583 = vshrl.u32 %v582, 7
  %v584 = vsub.s32 0, %v583
  %v585 = vrot.slane %v581, %v584
  %v587 = vsel %vm26, %v579, 0
  %v590 = vsel %vm26, %v580, 0
  %592 = vmatprep.subr.mxu0 0.0
  %593 = vmatpush1.msra.mxu0 %v70
  %594 = vmatprep.subr.mxu0 0.0
  %595 = vmatpush1.msra.mxu0 %v71
  %596 = vmatprep.subr.mxu0 0.0
  %597 = vmatpush1.msra.mxu0 %v72
  %598 = vmatprep.subr.mxu0 0.0
  %599 = vmatpush1.msra.mxu0 %v73
  %600 = vmatprep.subr.mxu0 0.0
  %601 = vmatpush1.msra.mxu0 0.0
  %602 = vmatprep.subr.mxu0 0.0
  %603 = vmatpush1.msra.mxu0 0.0
  %604 = vmatprep.subr.mxu0 0.0
  %605 = vmatpush1.msra.mxu0 0.0
  %606 = vmatprep.subr.mxu0 0.0
  %607 = vmatpush1.msra.mxu0 0.0
  %608 = vmatprep.subr.mxu0 0.0
  %609 = vmatpush1.msra.mxu0 0.0
  %610 = vmatprep.subr.mxu0 0.0
  %611 = vmatpush1.msra.mxu0 0.0
  %612 = vmatprep.subr.mxu0 0.0
  %613 = vmatpush1.msra.mxu0 0.0
  %614 = vmatprep.subr.mxu0 0.0
  %615 = vmatpush1.msra.mxu0 0.0
  %616 = vmatprep.subr.mxu0 0.0
  %617 = vmatpush1.msra.mxu0 0.0
  %618 = vmatprep.subr.mxu0 0.0
  %619 = vmatpush1.msra.mxu0 0.0
  %620 = vmatprep.subr.mxu0 0.0
  %621 = vmatpush1.msra.mxu0 0.0
  %622 = vmatprep.subr.mxu0 0.0
  %623 = vmatpush1.msra.mxu0 0.0
  %624 = vmatprep.subr.mxu0 0.0
  %625 = vmatpush1.msra.mxu0 0.0
  %626 = vmatprep.subr.mxu0 0.0
  %627 = vmatpush1.msra.mxu0 0.0
  %628 = vmatprep.subr.mxu0 0.0
  %629 = vmatpush1.msra.mxu0 0.0
  %630 = vmatprep.subr.mxu0 0.0
  %631 = vmatpush1.msra.mxu0 0.0
  %632 = vmatprep.subr.mxu0 0.0
  %633 = vmatpush1.msra.mxu0 0.0
  %634 = vmatprep.subr.mxu0 0.0
  %635 = vmatpush1.msra.mxu0 0.0
  %636 = vmatprep.subr.mxu0 0.0
  %637 = vmatpush1.msra.mxu0 0.0
  %638 = vmatprep.subr.mxu0 0.0
  %639 = vmatpush1.msra.mxu0 0.0
  %640 = vmatprep.subr.mxu0 0.0
  %641 = vmatpush1.msra.mxu0 0.0
  %642 = vmatprep.subr.mxu0 0.0
  %643 = vmatpush1.msra.mxu0 0.0
  %644 = vmatprep.subr.mxu0 0.0
  %645 = vmatpush1.msra.mxu0 0.0
  %646 = vmatprep.subr.mxu0 0.0
  %647 = vmatpush1.msra.mxu0 0.0
  %648 = vmatprep.subr.mxu0 0.0
  %649 = vmatpush1.msra.mxu0 0.0
  %650 = vmatprep.subr.mxu0 0.0
  %651 = vmatpush1.msra.mxu0 0.0
  %652 = vmatprep.subr.mxu0 0.0
  %653 = vmatpush1.msra.mxu0 0.0
  %654 = vmatprep.subr.mxu0 0.0
  %655 = vmatpush1.msra.mxu0 0.0
  %656 = vmatprep.mubr.f32.mxu0 0.0
  %657 = vmatmul.mubr.f32.gmra.mrb[0].mxu0 %v587
  %v658 = vpop.f32.mrb[0].mxu0
  %v659 = vadd.f32 %v585, %v658
  %v660 = vpop.f32.mrb[0].mxu0
  %661 = vmatprep.mubr.f32.mxu0 0.0
  %662 = vmatmul.mubr.f32.gmra.mrb[0].mxu0 %v590
  %v663 = vpop.f32.mrb[0].mxu0
  %v664 = vadd.f32 %v585, %v663
  %v665 = vpop.f32.mrb[0].mxu0
  %666 = vdwg.mxu0
  %v667 = vadd.f32 %v64, %v659
  %v668 = vadd.f32 %v65, %v664
  %v669 = vld [vmem:[%s4 + $0x4] sm:$0x1]
  %v670 = vld [vmem:[%s4 + $0x5] sm:$0x1]
  %v671 = vsel %vm26, %v667, 0.0
  %672 = vadd.xlane.f32.xlu0 %v671
  %v673 = vpop.xlane.xlu0 %672
  %v674 = vsel %vm26, %v668, 0.0
  %675 = vadd.xlane.f32.xlu0 %v674
  %v676 = vpop.xlane.xlu0 %675
  %v677 = vmul.f32 %v673, %v33
  %v678 = vmul.f32 %v676, %v33
  %v679 = vsub.f32 %v667, %v677
  %v680 = vsub.f32 %v668, %v678
  %v681 = vmul.f32 %v679, %v679
  %v682 = vmul.f32 %v680, %v680
  %v683 = vsel %vm26, %v681, 0.0
  %684 = vadd.xlane.f32.xlu0 %v683
  %v685 = vpop.xlane.xlu0 %684
  %v686 = vsel %vm26, %v682, 0.0
  %687 = vadd.xlane.f32.xlu0 %v686
  %v688 = vpop.xlane.xlu0 %687
  %v689 = vmul.f32 %v685, %v33
  %v690 = vmul.f32 %v688, %v33
  %v691 = vadd.f32 %v689, 1e-12
  %v692 = vadd.f32 %v690, 1e-12
  %v693 = vrsqrt.pop %v691
  %v694 = vrsqrt.pop %v692
  %v695 = vmul.f32 %v679, %v693
  %v696 = vmul.f32 %v680, %v694
  %v697 = vlaneseq
  %v698 = vshrl.u32 %v697, 7
  %v699 = vsub.s32 0, %v698
  %v700 = vrot.slane %v669, %v699
  %v701 = vmul.f32 %v695, %v700
  %v702 = vmul.f32 %v696, %v700
  %v703 = vlaneseq
  %v704 = vshrl.u32 %v703, 7
  %v705 = vsub.s32 0, %v704
  %v706 = vrot.slane %v670, %v705
  %v707 = vadd.f32 %v701, %v706
  %v708 = vadd.f32 %v702, %v706
  %v709 = vld [vmem:[%s4 + $0x6] sm:$0x1]
  %v710 = vlaneseq
  %v711 = vshrl.u32 %v710, 7
  %v712 = vsub.s32 0, %v711
  %v713 = vrot.slane %v709, %v712
  %v715 = vsel %vm26, %v707, 0
  %v718 = vsel %vm26, %v708, 0
  %720 = vmatprep.subr.mxu0 0.0
  %721 = vmatpush1.msra.mxu0 %v74
  %722 = vmatprep.subr.mxu0 0.0
  %723 = vmatpush1.msra.mxu0 %v75
  %724 = vmatprep.subr.mxu0 0.0
  %725 = vmatpush1.msra.mxu0 %v76
  %726 = vmatprep.subr.mxu0 0.0
  %727 = vmatpush1.msra.mxu0 %v77
  %728 = vmatprep.subr.mxu0 0.0
  %729 = vmatpush1.msra.mxu0 0.0
  %730 = vmatprep.subr.mxu0 0.0
  %731 = vmatpush1.msra.mxu0 0.0
  %732 = vmatprep.subr.mxu0 0.0
  %733 = vmatpush1.msra.mxu0 0.0
  %734 = vmatprep.subr.mxu0 0.0
  %735 = vmatpush1.msra.mxu0 0.0
  %736 = vmatprep.subr.mxu0 0.0
  %737 = vmatpush1.msra.mxu0 0.0
  %738 = vmatprep.subr.mxu0 0.0
  %739 = vmatpush1.msra.mxu0 0.0
  %740 = vmatprep.subr.mxu0 0.0
  %741 = vmatpush1.msra.mxu0 0.0
  %742 = vmatprep.subr.mxu0 0.0
  %743 = vmatpush1.msra.mxu0 0.0
  %744 = vmatprep.subr.mxu0 0.0
  %745 = vmatpush1.msra.mxu0 0.0
  %746 = vmatprep.subr.mxu0 0.0
  %747 = vmatpush1.msra.mxu0 0.0
  %748 = vmatprep.subr.mxu0 0.0
  %749 = vmatpush1.msra.mxu0 0.0
  %750 = vmatprep.subr.mxu0 0.0
  %751 = vmatpush1.msra.mxu0 0.0
  %752 = vmatprep.subr.mxu0 0.0
  %753 = vmatpush1.msra.mxu0 0.0
  %754 = vmatprep.subr.mxu0 0.0
  %755 = vmatpush1.msra.mxu0 0.0
  %756 = vmatprep.subr.mxu0 0.0
  %757 = vmatpush1.msra.mxu0 0.0
  %758 = vmatprep.subr.mxu0 0.0
  %759 = vmatpush1.msra.mxu0 0.0
  %760 = vmatprep.subr.mxu0 0.0
  %761 = vmatpush1.msra.mxu0 0.0
  %762 = vmatprep.subr.mxu0 0.0
  %763 = vmatpush1.msra.mxu0 0.0
  %764 = vmatprep.subr.mxu0 0.0
  %765 = vmatpush1.msra.mxu0 0.0
  %766 = vmatprep.subr.mxu0 0.0
  %767 = vmatpush1.msra.mxu0 0.0
  %768 = vmatprep.subr.mxu0 0.0
  %769 = vmatpush1.msra.mxu0 0.0
  %770 = vmatprep.subr.mxu0 0.0
  %771 = vmatpush1.msra.mxu0 0.0
  %772 = vmatprep.subr.mxu0 0.0
  %773 = vmatpush1.msra.mxu0 0.0
  %774 = vmatprep.subr.mxu0 0.0
  %775 = vmatpush1.msra.mxu0 0.0
  %776 = vmatprep.subr.mxu0 0.0
  %777 = vmatpush1.msra.mxu0 0.0
  %778 = vmatprep.subr.mxu0 0.0
  %779 = vmatpush1.msra.mxu0 0.0
  %780 = vmatprep.subr.mxu0 0.0
  %781 = vmatpush1.msra.mxu0 0.0
  %782 = vmatprep.subr.mxu0 0.0
  %783 = vmatpush1.msra.mxu0 0.0
  %784 = vmatprep.mubr.f32.mxu0 0.0
  %785 = vmatmul.mubr.f32.gmra.mrb[0].mxu0 %v715
  %v786 = vpop.f32.mrb[0].mxu0
  %v787 = vadd.f32 %v713, %v786
  %v788 = vpop.f32.mrb[0].mxu0
  %789 = vmatprep.mubr.f32.mxu0 0.0
  %790 = vmatmul.mubr.f32.gmra.mrb[0].mxu0 %v718
  %v791 = vpop.f32.mrb[0].mxu0
  %v792 = vadd.f32 %v713, %v791
  %v793 = vpop.f32.mrb[0].mxu0
  %794 = vdwg.mxu0
  %v795 = vmul.f32 %v787, 0.5
  %v796 = vmul.f32 %v792, 0.5
  %v797 = vmul.f32 %v787, 0.70710677
  %v798 = vmul.f32 %v792, 0.70710677
  %vm799 = vcmp.lt.f32.partialorder %v797, 0.0
  %vm800 = vcmp.lt.f32.partialorder %v798, 0.0
  %v801 = vsel %vm799, -1.0, 1.0
  %v802 = vsel %vm800, -1.0, 1.0
  %v803 = vand.u32 2147483647, %v797
  %v804 = vand.u32 2147483647, %v798
  %v805 = vmul.f32 %v803, 0.3275911
  %v806 = vmul.f32 %v804, 0.3275911
  %v807 = vadd.f32 %v805, 1.0
  %v808 = vadd.f32 %v806, 1.0
  %v809 = vrcp.pop %v807
  %v810 = vmul.f32 1.0, %v809
  %v811 = vrcp.pop %v808
  %v812 = vmul.f32 1.0, %v811
  %v813 = vmul.f32 %v810, 1.0614054
  %v814 = vmul.f32 %v812, 1.0614054
  %v815 = vadd.f32 %v813, -1.4531521
  %v816 = vadd.f32 %v814, -1.4531521
  %v817 = vmul.f32 %v815, %v810
  %v818 = vmul.f32 %v816, %v812
  %v819 = vadd.f32 %v817, 1.4214138
  %v820 = vadd.f32 %v818, 1.4214138
  %v821 = vmul.f32 %v819, %v810
  %v822 = vmul.f32 %v820, %v812
  %v823 = vadd.f32 %v821, -0.28449672
  %v824 = vadd.f32 %v822, -0.28449672
  %v825 = vmul.f32 %v823, %v810
  %v826 = vmul.f32 %v824, %v812
  %v827 = vadd.f32 %v825, 0.2548296
  %v828 = vadd.f32 %v826, 0.2548296
  %v829 = vmul.f32 %v827, %v810
  %v830 = vmul.f32 %v828, %v812
  %v831 = vsub.f32 0.0, %v803
  %v832 = vsub.f32 0.0, %v804
  %v833 = vmul.f32 %v831, %v803
  %v834 = vmul.f32 %v832, %v804
  %v835 = vmul.f32 %v833, 1.442695
  %v836 = vpow.pop %v835
  %v837 = vmul.f32 %v834, 1.442695
  %v838 = vpow.pop %v837
  %v839 = vmul.f32 %v829, %v836
  %v840 = vmul.f32 %v830, %v838
  %v841 = vsub.f32 1.0, %v839
  %v842 = vsub.f32 1.0, %v840
  %v843 = vmul.f32 %v801, %v841
  %v844 = vmul.f32 %v802, %v842
  %v845 = vadd.f32 %v843, 1.0
  %v846 = vadd.f32 %v844, 1.0
  %v847 = vmul.f32 %v795, %v845
  %v848 = vmul.f32 %v796, %v846
  %v849 = vld [vmem:[%s4 + $0x7] sm:$0x1]
  %v850 = vlaneseq
  %v851 = vshrl.u32 %v850, 7
  %v852 = vsub.s32 0, %v851
  %v853 = vrot.slane %v849, %v852
  %vm854 = vcmask 523264
  %v856 = vsel %vm854, %v847, 0
  %v859 = vsel %vm854, %v848, 0
  %861 = vmatprep.subr.mxu0 0.0
  %862 = vmatpush1.msra.mxu0 %v78
  %863 = vmatprep.subr.mxu0 0.0
  %864 = vmatpush1.msra.mxu0 %v79
  %865 = vmatprep.subr.mxu0 0.0
  %866 = vmatpush1.msra.mxu0 %v80
  %867 = vmatprep.subr.mxu0 0.0
  %868 = vmatpush1.msra.mxu0 %v81
  %869 = vmatprep.subr.mxu0 0.0
  %870 = vmatpush1.msra.mxu0 %v82
  %871 = vmatprep.subr.mxu0 0.0
  %872 = vmatpush1.msra.mxu0 %v83
  %873 = vmatprep.subr.mxu0 0.0
  %874 = vmatpush1.msra.mxu0 %v84
  %875 = vmatprep.subr.mxu0 0.0
  %876 = vmatpush1.msra.mxu0 %v85
  %877 = vmatprep.subr.mxu0 0.0
  %878 = vmatpush1.msra.mxu0 0.0
  %879 = vmatprep.subr.mxu0 0.0
  %880 = vmatpush1.msra.mxu0 0.0
  %881 = vmatprep.subr.mxu0 0.0
  %882 = vmatpush1.msra.mxu0 0.0
  %883 = vmatprep.subr.mxu0 0.0
  %884 = vmatpush1.msra.mxu0 0.0
  %885 = vmatprep.subr.mxu0 0.0
  %886 = vmatpush1.msra.mxu0 0.0
  %887 = vmatprep.subr.mxu0 0.0
  %888 = vmatpush1.msra.mxu0 0.0
  %889 = vmatprep.subr.mxu0 0.0
  %890 = vmatpush1.msra.mxu0 0.0
  %891 = vmatprep.subr.mxu0 0.0
  %892 = vmatpush1.msra.mxu0 0.0
  %893 = vmatprep.subr.mxu0 0.0
  %894 = vmatpush1.msra.mxu0 0.0
  %895 = vmatprep.subr.mxu0 0.0
  %896 = vmatpush1.msra.mxu0 0.0
  %897 = vmatprep.subr.mxu0 0.0
  %898 = vmatpush1.msra.mxu0 0.0
  %899 = vmatprep.subr.mxu0 0.0
  %900 = vmatpush1.msra.mxu0 0.0
  %901 = vmatprep.subr.mxu0 0.0
  %902 = vmatpush1.msra.mxu0 0.0
  %903 = vmatprep.subr.mxu0 0.0
  %904 = vmatpush1.msra.mxu0 0.0
  %905 = vmatprep.subr.mxu0 0.0
  %906 = vmatpush1.msra.mxu0 0.0
  %907 = vmatprep.subr.mxu0 0.0
  %908 = vmatpush1.msra.mxu0 0.0
  %909 = vmatprep.subr.mxu0 0.0
  %910 = vmatpush1.msra.mxu0 0.0
  %911 = vmatprep.subr.mxu0 0.0
  %912 = vmatpush1.msra.mxu0 0.0
  %913 = vmatprep.subr.mxu0 0.0
  %914 = vmatpush1.msra.mxu0 0.0
  %915 = vmatprep.subr.mxu0 0.0
  %916 = vmatpush1.msra.mxu0 0.0
  %917 = vmatprep.subr.mxu0 0.0
  %918 = vmatpush1.msra.mxu0 0.0
  %919 = vmatprep.subr.mxu0 0.0
  %920 = vmatpush1.msra.mxu0 0.0
  %921 = vmatprep.subr.mxu0 0.0
  %922 = vmatpush1.msra.mxu0 0.0
  %923 = vmatprep.subr.mxu0 0.0
  %924 = vmatpush1.msra.mxu0 0.0
  %925 = vmatprep.mubr.f32.mxu0 0.0
  %926 = vmatmul.mubr.f32.gmra.mrb[0].mxu0 %v856
  %v927 = vpop.f32.mrb[0].mxu0
  %v928 = vadd.f32 %v853, %v927
  %v929 = vpop.f32.mrb[0].mxu0
  %930 = vmatprep.mubr.f32.mxu0 0.0
  %931 = vmatmul.mubr.f32.gmra.mrb[0].mxu0 %v859
  %v932 = vpop.f32.mrb[0].mxu0
  %v933 = vadd.f32 %v853, %v932
  %v934 = vpop.f32.mrb[0].mxu0
  %935 = vdwg.mxu0
  %v936 = vadd.f32 %v707, %v928
  %v937 = vadd.f32 %v708, %v933
  %v938 = vld [vmem:[%s4 + $0x8] sm:$0x1]
  %v939 = vld [vmem:[%s4 + $0x9] sm:$0x1]
  %v940 = vsel %vm26, %v936, 0.0
  %941 = vadd.xlane.f32.xlu0 %v940
  %v942 = vpop.xlane.xlu0 %941
  %v943 = vsel %vm26, %v937, 0.0
  %944 = vadd.xlane.f32.xlu0 %v943
  %v945 = vpop.xlane.xlu0 %944
  %v946 = vmul.f32 %v942, %v33
  %v947 = vmul.f32 %v945, %v33
  %v948 = vsub.f32 %v936, %v946
  %v949 = vsub.f32 %v937, %v947
  %v950 = vmul.f32 %v948, %v948
  %v951 = vmul.f32 %v949, %v949
  %v952 = vsel %vm26, %v950, 0.0
  %953 = vadd.xlane.f32.xlu0 %v952
  %v954 = vpop.xlane.xlu0 %953
  %v955 = vsel %vm26, %v951, 0.0
  %956 = vadd.xlane.f32.xlu0 %v955
  %v957 = vpop.xlane.xlu0 %956
  %v958 = vmul.f32 %v954, %v33
  %v959 = vmul.f32 %v957, %v33
  %v960 = vadd.f32 %v958, 1e-12
  %v961 = vadd.f32 %v959, 1e-12
  %v962 = vrsqrt.pop %v960
  %v963 = vrsqrt.pop %v961
  %v964 = vmul.f32 %v948, %v962
  %v965 = vmul.f32 %v949, %v963
  %v966 = vlaneseq
  %v967 = vshrl.u32 %v966, 7
  %v968 = vsub.s32 0, %v967
  %v969 = vrot.slane %v938, %v968
  %v970 = vmul.f32 %v964, %v969
  %v971 = vmul.f32 %v965, %v969
  %v972 = vlaneseq
  %v973 = vshrl.u32 %v972, 7
  %v974 = vsub.s32 0, %v973
  %v975 = vrot.slane %v939, %v974
  %v976 = vadd.f32 %v970, %v975
  %v977 = vadd.f32 %v971, %v975
  %s978 = scalar_lea.vmem %s2, 96
  %v979 = vld [vmem:[%s978] sm:$0xff]
  %v980 = vld [vmem:[%s978 + $0x18] sm:$0xff]
  %v981 = vld [vmem:[%s978 + $0x30] sm:$0xff]
  %v982 = vld [vmem:[%s978 + $0x48] sm:$0xff]
  %v983 = vld [vmem:[%s978 + $0x8] sm:$0xff]
  %v984 = vld [vmem:[%s978 + $0x20] sm:$0xff]
  %v985 = vld [vmem:[%s978 + $0x38] sm:$0xff]
  %v986 = vld [vmem:[%s978 + $0x50] sm:$0xff]
  %v987 = vld [vmem:[%s978 + $0x10] sm:$0xff]
  %v988 = vld [vmem:[%s978 + $0x28] sm:$0xff]
  %v989 = vld [vmem:[%s978 + $0x40] sm:$0xff]
  %v990 = vld [vmem:[%s978 + $0x58] sm:$0xff]
  %s991 = scalar_lea.vmem %s3, 64
  %v992 = vld [vmem:[%s991] sm:$0xff]
  %v993 = vld [vmem:[%s991 + $0x8] sm:$0xff]
  %v994 = vld [vmem:[%s991 + $0x10] sm:$0xff]
  %v995 = vld [vmem:[%s991 + $0x18] sm:$0xff]
  %v996 = vld [vmem:[%s991 + $0x20] sm:$0xff]
  %v997 = vld [vmem:[%s991 + $0x28] sm:$0xff]
  %v998 = vld [vmem:[%s991 + $0x30] sm:$0xff]
  %v999 = vld [vmem:[%s991 + $0x38] sm:$0xff]
  %v1000 = vld [vmem:[%s4 + $0xa] sm:$0x1]
  %v1001 = vlaneseq
  %v1002 = vshrl.u32 %v1001, 7
  %v1003 = vsub.s32 0, %v1002
  %v1004 = vrot.slane %v1000, %v1003
  %v1006 = vsel %vm26, %v976, 0
  %v1009 = vsel %vm26, %v977, 0
  %1011 = vmatprep.subr.mxu0 0.0
  %1012 = vmatpush1.msra.mxu0 %v979
  %1013 = vmatprep.subr.mxu0 0.0
  %1014 = vmatpush1.msra.mxu0 %v980
  %1015 = vmatprep.subr.mxu0 0.0
  %1016 = vmatpush1.msra.mxu0 %v981
  %1017 = vmatprep.subr.mxu0 0.0
  %1018 = vmatpush1.msra.mxu0 %v982
  %1019 = vmatprep.subr.mxu0 0.0
  %1020 = vmatpush1.msra.mxu0 0.0
  %1021 = vmatprep.subr.mxu0 0.0
  %1022 = vmatpush1.msra.mxu0 0.0
  %1023 = vmatprep.subr.mxu0 0.0
  %1024 = vmatpush1.msra.mxu0 0.0
  %1025 = vmatprep.subr.mxu0 0.0
  %1026 = vmatpush1.msra.mxu0 0.0
  %1027 = vmatprep.subr.mxu0 0.0
  %1028 = vmatpush1.msra.mxu0 0.0
  %1029 = vmatprep.subr.mxu0 0.0
  %1030 = vmatpush1.msra.mxu0 0.0
  %1031 = vmatprep.subr.mxu0 0.0
  %1032 = vmatpush1.msra.mxu0 0.0
  %1033 = vmatprep.subr.mxu0 0.0
  %1034 = vmatpush1.msra.mxu0 0.0
  %1035 = vmatprep.subr.mxu0 0.0
  %1036 = vmatpush1.msra.mxu0 0.0
  %1037 = vmatprep.subr.mxu0 0.0
  %1038 = vmatpush1.msra.mxu0 0.0
  %1039 = vmatprep.subr.mxu0 0.0
  %1040 = vmatpush1.msra.mxu0 0.0
  %1041 = vmatprep.subr.mxu0 0.0
  %1042 = vmatpush1.msra.mxu0 0.0
  %1043 = vmatprep.subr.mxu0 0.0
  %1044 = vmatpush1.msra.mxu0 0.0
  %1045 = vmatprep.subr.mxu0 0.0
  %1046 = vmatpush1.msra.mxu0 0.0
  %1047 = vmatprep.subr.mxu0 0.0
  %1048 = vmatpush1.msra.mxu0 0.0
  %1049 = vmatprep.subr.mxu0 0.0
  %1050 = vmatpush1.msra.mxu0 0.0
  %1051 = vmatprep.subr.mxu0 0.0
  %1052 = vmatpush1.msra.mxu0 0.0
  %1053 = vmatprep.subr.mxu0 0.0
  %1054 = vmatpush1.msra.mxu0 0.0
  %1055 = vmatprep.subr.mxu0 0.0
  %1056 = vmatpush1.msra.mxu0 0.0
  %1057 = vmatprep.subr.mxu0 0.0
  %1058 = vmatpush1.msra.mxu0 0.0
  %1059 = vmatprep.subr.mxu0 0.0
  %1060 = vmatpush1.msra.mxu0 0.0
  %1061 = vmatprep.subr.mxu0 0.0
  %1062 = vmatpush1.msra.mxu0 0.0
  %1063 = vmatprep.subr.mxu0 0.0
  %1064 = vmatpush1.msra.mxu0 0.0
  %1065 = vmatprep.subr.mxu0 0.0
  %1066 = vmatpush1.msra.mxu0 0.0
  %1067 = vmatprep.subr.mxu0 0.0
  %1068 = vmatpush1.msra.mxu0 0.0
  %1069 = vmatprep.subr.mxu0 0.0
  %1070 = vmatpush1.msra.mxu0 0.0
  %1071 = vmatprep.subr.mxu0 0.0
  %1072 = vmatpush1.msra.mxu0 0.0
  %1073 = vmatprep.subr.mxu0 0.0
  %1074 = vmatpush1.msra.mxu0 0.0
  %1075 = vmatprep.mubr.f32.mxu0 0.0
  %1076 = vmatmul.mubr.f32.gmra.mrb[0].mxu0 %v1006
  %v1077 = vpop.f32.mrb[0].mxu0
  %v1078 = vadd.f32 %v1004, %v1077
  %v1079 = vpop.f32.mrb[0].mxu0
  %1080 = vmatprep.mubr.f32.mxu0 0.0
  %1081 = vmatmul.mubr.f32.gmra.mrb[0].mxu0 %v1009
  %v1082 = vpop.f32.mrb[0].mxu0
  %v1083 = vadd.f32 %v1004, %v1082
  %v1084 = vpop.f32.mrb[0].mxu0
  %1085 = vdwg.mxu0
  %1088 = vrot.lane.b32.xlu0 %v1078, 96
  %v1089 = vpop.permute.xlu0 %1088
  %1090 = vrot.lane.b32.xlu0 %v1083, 96
  %v1091 = vpop.permute.xlu0 %1090
  %v1092 = vsel %vm178, %v1078, 0
  %v1094 = vsel %vm178, %v1083, 0
  %v1096 = vsel %vm178, %v1089, 0
  %v1098 = vsel %vm178, %v1091, 0
  %1100 = vmatprep.subr.mxu0 0.0
  %1101 = vmatpush1.xpose.msra.mxu0 %v1096
  %1102 = vmatprep.subr.mxu0 0.0
  %1103 = vmatpush1.xpose.msra.mxu0 %v1098
  %1104 = vmatprep.subr.mxu0 0.0
  %1105 = vmatpush1.xpose.msra.mxu0 0.0
  %1106 = vmatprep.subr.mxu0 0.0
  %1107 = vmatpush1.xpose.msra.mxu0 0.0
  %1108 = vmatprep.subr.mxu0 0.0
  %1109 = vmatpush1.xpose.msra.mxu0 0.0
  %1110 = vmatprep.subr.mxu0 0.0
  %1111 = vmatpush1.xpose.msra.mxu0 0.0
  %1112 = vmatprep.subr.mxu0 0.0
  %1113 = vmatpush1.xpose.msra.mxu0 0.0
  %1114 = vmatprep.subr.mxu0 0.0
  %1115 = vmatpush1.xpose.msra.mxu0 0.0
  %1116 = vmatprep.subr.mxu0 0.0
  %1117 = vmatpush1.xpose.msra.mxu0 0.0
  %1118 = vmatprep.subr.mxu0 0.0
  %1119 = vmatpush1.xpose.msra.mxu0 0.0
  %1120 = vmatprep.subr.mxu0 0.0
  %1121 = vmatpush1.xpose.msra.mxu0 0.0
  %1122 = vmatprep.subr.mxu0 0.0
  %1123 = vmatpush1.xpose.msra.mxu0 0.0
  %1124 = vmatprep.subr.mxu0 0.0
  %1125 = vmatpush1.xpose.msra.mxu0 0.0
  %1126 = vmatprep.subr.mxu0 0.0
  %1127 = vmatpush1.xpose.msra.mxu0 0.0
  %1128 = vmatprep.subr.mxu0 0.0
  %1129 = vmatpush1.xpose.msra.mxu0 0.0
  %1130 = vmatprep.subr.mxu0 0.0
  %1131 = vmatpush1.xpose.msra.mxu0 0.0
  %1132 = vmatprep.subr.mxu0 0.0
  %1133 = vmatpush1.xpose.msra.mxu0 0.0
  %1134 = vmatprep.subr.mxu0 0.0
  %1135 = vmatpush1.xpose.msra.mxu0 0.0
  %1136 = vmatprep.subr.mxu0 0.0
  %1137 = vmatpush1.xpose.msra.mxu0 0.0
  %1138 = vmatprep.subr.mxu0 0.0
  %1139 = vmatpush1.xpose.msra.mxu0 0.0
  %1140 = vmatprep.subr.mxu0 0.0
  %1141 = vmatpush1.xpose.msra.mxu0 0.0
  %1142 = vmatprep.subr.mxu0 0.0
  %1143 = vmatpush1.xpose.msra.mxu0 0.0
  %1144 = vmatprep.subr.mxu0 0.0
  %1145 = vmatpush1.xpose.msra.mxu0 0.0
  %1146 = vmatprep.subr.mxu0 0.0
  %1147 = vmatpush1.xpose.msra.mxu0 0.0
  %1148 = vmatprep.subr.mxu0 0.0
  %1149 = vmatpush1.xpose.msra.mxu0 0.0
  %1150 = vmatprep.subr.mxu0 0.0
  %1151 = vmatpush1.xpose.msra.mxu0 0.0
  %1152 = vmatprep.subr.mxu0 0.0
  %1153 = vmatpush1.xpose.msra.mxu0 0.0
  %1154 = vmatprep.subr.mxu0 0.0
  %1155 = vmatpush1.xpose.msra.mxu0 0.0
  %1156 = vmatprep.subr.mxu0 0.0
  %1157 = vmatpush1.xpose.msra.mxu0 0.0
  %1158 = vmatprep.subr.mxu0 0.0
  %1159 = vmatpush1.xpose.msra.mxu0 0.0
  %1160 = vmatprep.subr.mxu0 0.0
  %1161 = vmatpush1.xpose.msra.mxu0 0.0
  %1162 = vmatprep.subr.mxu0 0.0
  %1163 = vmatpush1.xpose.msra.mxu0 0.0
  %1164 = vmatprep.mubr.f32.mxu0 0.0
  %1165 = vmatmul.mubr.f32.gmra.mrb[0].mxu0 %v1092
  %v1166 = vpop.f32.mrb[0].mxu0
  %v1167 = vadd.f32 %v20, %v1166
  %v1168 = vpop.f32.mrb[0].mxu0
  %1169 = vmatprep.mubr.f32.mxu0 0.0
  %1170 = vmatmul.mubr.f32.gmra.mrb[0].mxu0 %v1094
  %v1171 = vpop.f32.mrb[0].mxu0
  %v1172 = vadd.f32 %v21, %v1171
  %v1173 = vpop.f32.mrb[0].mxu0
  %1174 = vdwg.mxu0
  %v1175 = vsel %vm178, %v1167, -inf
  %1176 = vmax.xlane.f32.xlu0 %v1175
  %v1177 = vpop.xlane.xlu0 %1176
  %v1178 = vsel %vm178, %v1172, -inf
  %1179 = vmax.xlane.f32.xlu0 %v1178
  %v1180 = vpop.xlane.xlu0 %1179
  %v1181 = vsub.f32 %v1167, %v1177
  %v1182 = vsub.f32 %v1172, %v1180
  %v1183 = vmul.f32 %v1181, 1.442695
  %v1184 = vpow.pop %v1183
  %v1185 = vmul.f32 %v1182, 1.442695
  %v1186 = vpow.pop %v1185
  %v1187 = vsel %vm178, %v1184, 0.0
  %1188 = vadd.xlane.f32.xlu0 %v1187
  %v1189 = vpop.xlane.xlu0 %1188
  %v1190 = vsel %vm178, %v1186, 0.0
  %1191 = vadd.xlane.f32.xlu0 %v1190
  %v1192 = vpop.xlane.xlu0 %1191
  %v1193 = vrcp.pop %v1189
  %v1194 = vrcp.pop %v1192
  %v1195 = vmul.f32 %v1184, %v1193
  %v1196 = vmul.f32 %v1186, %v1194
  %1197 = vrot.lane.b32.xlu0 %v1078, 64
  %v1198 = vpop.permute.xlu0 %1197
  %1199 = vrot.lane.b32.xlu0 %v1083, 64
  %v1200 = vpop.permute.xlu0 %1199
  %v1204 = vsel %vm178, %v1195, 0
  %v1207 = vsel %vm178, %v1196, 0
  %1209 = vmatprep.subr.mxu0 0.0
  %1210 = vmatpush1.msra.mxu0 %v1198
  %1211 = vmatprep.subr.mxu0 0.0
  %1212 = vmatpush1.msra.mxu0 %v1200
  %1213 = vmatprep.subr.mxu0 0.0
  %1214 = vmatpush1.msra.mxu0 0.0
  %1215 = vmatprep.subr.mxu0 0.0
  %1216 = vmatpush1.msra.mxu0 0.0
  %1217 = vmatprep.subr.mxu0 0.0
  %1218 = vmatpush1.msra.mxu0 0.0
  %1219 = vmatprep.subr.mxu0 0.0
  %1220 = vmatpush1.msra.mxu0 0.0
  %1221 = vmatprep.subr.mxu0 0.0
  %1222 = vmatpush1.msra.mxu0 0.0
  %1223 = vmatprep.subr.mxu0 0.0
  %1224 = vmatpush1.msra.mxu0 0.0
  %1225 = vmatprep.subr.mxu0 0.0
  %1226 = vmatpush1.msra.mxu0 0.0
  %1227 = vmatprep.subr.mxu0 0.0
  %1228 = vmatpush1.msra.mxu0 0.0
  %1229 = vmatprep.subr.mxu0 0.0
  %1230 = vmatpush1.msra.mxu0 0.0
  %1231 = vmatprep.subr.mxu0 0.0
  %1232 = vmatpush1.msra.mxu0 0.0
  %1233 = vmatprep.subr.mxu0 0.0
  %1234 = vmatpush1.msra.mxu0 0.0
  %1235 = vmatprep.subr.mxu0 0.0
  %1236 = vmatpush1.msra.mxu0 0.0
  %1237 = vmatprep.subr.mxu0 0.0
  %1238 = vmatpush1.msra.mxu0 0.0
  %1239 = vmatprep.subr.mxu0 0.0
  %1240 = vmatpush1.msra.mxu0 0.0
  %1241 = vmatprep.subr.mxu0 0.0
  %1242 = vmatpush1.msra.mxu0 0.0
  %1243 = vmatprep.subr.mxu0 0.0
  %1244 = vmatpush1.msra.mxu0 0.0
  %1245 = vmatprep.subr.mxu0 0.0
  %1246 = vmatpush1.msra.mxu0 0.0
  %1247 = vmatprep.subr.mxu0 0.0
  %1248 = vmatpush1.msra.mxu0 0.0
  %1249 = vmatprep.subr.mxu0 0.0
  %1250 = vmatpush1.msra.mxu0 0.0
  %1251 = vmatprep.subr.mxu0 0.0
  %1252 = vmatpush1.msra.mxu0 0.0
  %1253 = vmatprep.subr.mxu0 0.0
  %1254 = vmatpush1.msra.mxu0 0.0
  %1255 = vmatprep.subr.mxu0 0.0
  %1256 = vmatpush1.msra.mxu0 0.0
  %1257 = vmatprep.subr.mxu0 0.0
  %1258 = vmatpush1.msra.mxu0 0.0
  %1259 = vmatprep.subr.mxu0 0.0
  %1260 = vmatpush1.msra.mxu0 0.0
  %1261 = vmatprep.subr.mxu0 0.0
  %1262 = vmatpush1.msra.mxu0 0.0
  %1263 = vmatprep.subr.mxu0 0.0
  %1264 = vmatpush1.msra.mxu0 0.0
  %1265 = vmatprep.subr.mxu0 0.0
  %1266 = vmatpush1.msra.mxu0 0.0
  %1267 = vmatprep.subr.mxu0 0.0
  %1268 = vmatpush1.msra.mxu0 0.0
  %1269 = vmatprep.subr.mxu0 0.0
  %1270 = vmatpush1.msra.mxu0 0.0
  %1271 = vmatprep.subr.mxu0 0.0
  %1272 = vmatpush1.msra.mxu0 0.0
  %1273 = vmatprep.mubr.f32.mxu0 0.0
  %1274 = vmatmul.mubr.f32.gmra.mrb[0].mxu0 %v1204
  %v1275 = vpop.f32.mrb[0].mxu0
  %v1276 = vadd.f32 0.0, %v1275
  %v1277 = vpop.f32.mrb[0].mxu0
  %1278 = vmatprep.mubr.f32.mxu0 0.0
  %1279 = vmatmul.mubr.f32.gmra.mrb[0].mxu0 %v1207
  %v1280 = vpop.f32.mrb[0].mxu0
  %v1281 = vadd.f32 0.0, %v1280
  %v1282 = vpop.f32.mrb[0].mxu0
  %1283 = vdwg.mxu0
  %1284 = vrot.lane.b32.xlu0 %v1078, 112
  %v1285 = vpop.permute.xlu0 %1284
  %1286 = vrot.lane.b32.xlu0 %v1083, 112
  %v1287 = vpop.permute.xlu0 %1286
  %1288 = vrot.lane.b32.xlu0 %v1078, 80
  %v1289 = vpop.permute.xlu0 %1288
  %1290 = vrot.lane.b32.xlu0 %v1083, 80
  %v1291 = vpop.permute.xlu0 %1290
  %v1292 = vsel %vm178, %v1285, 0
  %v1294 = vsel %vm178, %v1287, 0
  %v1296 = vsel %vm178, %v1289, 0
  %v1298 = vsel %vm178, %v1291, 0
  %1300 = vmatprep.subr.mxu0 0.0
  %1301 = vmatpush1.xpose.msra.mxu0 %v1296
  %1302 = vmatprep.subr.mxu0 0.0
  %1303 = vmatpush1.xpose.msra.mxu0 %v1298
  %1304 = vmatprep.subr.mxu0 0.0
  %1305 = vmatpush1.xpose.msra.mxu0 0.0
  %1306 = vmatprep.subr.mxu0 0.0
  %1307 = vmatpush1.xpose.msra.mxu0 0.0
  %1308 = vmatprep.subr.mxu0 0.0
  %1309 = vmatpush1.xpose.msra.mxu0 0.0
  %1310 = vmatprep.subr.mxu0 0.0
  %1311 = vmatpush1.xpose.msra.mxu0 0.0
  %1312 = vmatprep.subr.mxu0 0.0
  %1313 = vmatpush1.xpose.msra.mxu0 0.0
  %1314 = vmatprep.subr.mxu0 0.0
  %1315 = vmatpush1.xpose.msra.mxu0 0.0
  %1316 = vmatprep.subr.mxu0 0.0
  %1317 = vmatpush1.xpose.msra.mxu0 0.0
  %1318 = vmatprep.subr.mxu0 0.0
  %1319 = vmatpush1.xpose.msra.mxu0 0.0
  %1320 = vmatprep.subr.mxu0 0.0
  %1321 = vmatpush1.xpose.msra.mxu0 0.0
  %1322 = vmatprep.subr.mxu0 0.0
  %1323 = vmatpush1.xpose.msra.mxu0 0.0
  %1324 = vmatprep.subr.mxu0 0.0
  %1325 = vmatpush1.xpose.msra.mxu0 0.0
  %1326 = vmatprep.subr.mxu0 0.0
  %1327 = vmatpush1.xpose.msra.mxu0 0.0
  %1328 = vmatprep.subr.mxu0 0.0
  %1329 = vmatpush1.xpose.msra.mxu0 0.0
  %1330 = vmatprep.subr.mxu0 0.0
  %1331 = vmatpush1.xpose.msra.mxu0 0.0
  %1332 = vmatprep.subr.mxu0 0.0
  %1333 = vmatpush1.xpose.msra.mxu0 0.0
  %1334 = vmatprep.subr.mxu0 0.0
  %1335 = vmatpush1.xpose.msra.mxu0 0.0
  %1336 = vmatprep.subr.mxu0 0.0
  %1337 = vmatpush1.xpose.msra.mxu0 0.0
  %1338 = vmatprep.subr.mxu0 0.0
  %1339 = vmatpush1.xpose.msra.mxu0 0.0
  %1340 = vmatprep.subr.mxu0 0.0
  %1341 = vmatpush1.xpose.msra.mxu0 0.0
  %1342 = vmatprep.subr.mxu0 0.0
  %1343 = vmatpush1.xpose.msra.mxu0 0.0
  %1344 = vmatprep.subr.mxu0 0.0
  %1345 = vmatpush1.xpose.msra.mxu0 0.0
  %1346 = vmatprep.subr.mxu0 0.0
  %1347 = vmatpush1.xpose.msra.mxu0 0.0
  %1348 = vmatprep.subr.mxu0 0.0
  %1349 = vmatpush1.xpose.msra.mxu0 0.0
  %1350 = vmatprep.subr.mxu0 0.0
  %1351 = vmatpush1.xpose.msra.mxu0 0.0
  %1352 = vmatprep.subr.mxu0 0.0
  %1353 = vmatpush1.xpose.msra.mxu0 0.0
  %1354 = vmatprep.subr.mxu0 0.0
  %1355 = vmatpush1.xpose.msra.mxu0 0.0
  %1356 = vmatprep.subr.mxu0 0.0
  %1357 = vmatpush1.xpose.msra.mxu0 0.0
  %1358 = vmatprep.subr.mxu0 0.0
  %1359 = vmatpush1.xpose.msra.mxu0 0.0
  %1360 = vmatprep.subr.mxu0 0.0
  %1361 = vmatpush1.xpose.msra.mxu0 0.0
  %1362 = vmatprep.subr.mxu0 0.0
  %1363 = vmatpush1.xpose.msra.mxu0 0.0
  %1364 = vmatprep.mubr.f32.mxu0 0.0
  %1365 = vmatmul.mubr.f32.gmra.mrb[0].mxu0 %v1292
  %v1366 = vpop.f32.mrb[0].mxu0
  %v1367 = vadd.f32 %v20, %v1366
  %v1368 = vpop.f32.mrb[0].mxu0
  %1369 = vmatprep.mubr.f32.mxu0 0.0
  %1370 = vmatmul.mubr.f32.gmra.mrb[0].mxu0 %v1294
  %v1371 = vpop.f32.mrb[0].mxu0
  %v1372 = vadd.f32 %v21, %v1371
  %v1373 = vpop.f32.mrb[0].mxu0
  %1374 = vdwg.mxu0
  %v1375 = vsel %vm178, %v1367, -inf
  %1376 = vmax.xlane.f32.xlu0 %v1375
  %v1377 = vpop.xlane.xlu0 %1376
  %v1378 = vsel %vm178, %v1372, -inf
  %1379 = vmax.xlane.f32.xlu0 %v1378
  %v1380 = vpop.xlane.xlu0 %1379
  %v1381 = vsub.f32 %v1367, %v1377
  %v1382 = vsub.f32 %v1372, %v1380
  %v1383 = vmul.f32 %v1381, 1.442695
  %v1384 = vpow.pop %v1383
  %v1385 = vmul.f32 %v1382, 1.442695
  %v1386 = vpow.pop %v1385
  %v1387 = vsel %vm178, %v1384, 0.0
  %1388 = vadd.xlane.f32.xlu0 %v1387
  %v1389 = vpop.xlane.xlu0 %1388
  %v1390 = vsel %vm178, %v1386, 0.0
  %1391 = vadd.xlane.f32.xlu0 %v1390
  %v1392 = vpop.xlane.xlu0 %1391
  %v1393 = vrcp.pop %v1389
  %v1394 = vrcp.pop %v1392
  %v1395 = vmul.f32 %v1384, %v1393
  %v1396 = vmul.f32 %v1386, %v1394
  %1397 = vrot.lane.b32.xlu0 %v1078, 48
  %v1398 = vpop.permute.xlu0 %1397
  %1399 = vrot.lane.b32.xlu0 %v1083, 48
  %v1400 = vpop.permute.xlu0 %1399
  %v1404 = vsel %vm178, %v1395, 0
  %v1407 = vsel %vm178, %v1396, 0
  %1409 = vmatprep.subr.mxu0 0.0
  %1410 = vmatpush1.msra.mxu0 %v1398
  %1411 = vmatprep.subr.mxu0 0.0
  %1412 = vmatpush1.msra.mxu0 %v1400
  %1413 = vmatprep.subr.mxu0 0.0
  %1414 = vmatpush1.msra.mxu0 0.0
  %1415 = vmatprep.subr.mxu0 0.0
  %1416 = vmatpush1.msra.mxu0 0.0
  %1417 = vmatprep.subr.mxu0 0.0
  %1418 = vmatpush1.msra.mxu0 0.0
  %1419 = vmatprep.subr.mxu0 0.0
  %1420 = vmatpush1.msra.mxu0 0.0
  %1421 = vmatprep.subr.mxu0 0.0
  %1422 = vmatpush1.msra.mxu0 0.0
  %1423 = vmatprep.subr.mxu0 0.0
  %1424 = vmatpush1.msra.mxu0 0.0
  %1425 = vmatprep.subr.mxu0 0.0
  %1426 = vmatpush1.msra.mxu0 0.0
  %1427 = vmatprep.subr.mxu0 0.0
  %1428 = vmatpush1.msra.mxu0 0.0
  %1429 = vmatprep.subr.mxu0 0.0
  %1430 = vmatpush1.msra.mxu0 0.0
  %1431 = vmatprep.subr.mxu0 0.0
  %1432 = vmatpush1.msra.mxu0 0.0
  %1433 = vmatprep.subr.mxu0 0.0
  %1434 = vmatpush1.msra.mxu0 0.0
  %1435 = vmatprep.subr.mxu0 0.0
  %1436 = vmatpush1.msra.mxu0 0.0
  %1437 = vmatprep.subr.mxu0 0.0
  %1438 = vmatpush1.msra.mxu0 0.0
  %1439 = vmatprep.subr.mxu0 0.0
  %1440 = vmatpush1.msra.mxu0 0.0
  %1441 = vmatprep.subr.mxu0 0.0
  %1442 = vmatpush1.msra.mxu0 0.0
  %1443 = vmatprep.subr.mxu0 0.0
  %1444 = vmatpush1.msra.mxu0 0.0
  %1445 = vmatprep.subr.mxu0 0.0
  %1446 = vmatpush1.msra.mxu0 0.0
  %1447 = vmatprep.subr.mxu0 0.0
  %1448 = vmatpush1.msra.mxu0 0.0
  %1449 = vmatprep.subr.mxu0 0.0
  %1450 = vmatpush1.msra.mxu0 0.0
  %1451 = vmatprep.subr.mxu0 0.0
  %1452 = vmatpush1.msra.mxu0 0.0
  %1453 = vmatprep.subr.mxu0 0.0
  %1454 = vmatpush1.msra.mxu0 0.0
  %1455 = vmatprep.subr.mxu0 0.0
  %1456 = vmatpush1.msra.mxu0 0.0
  %1457 = vmatprep.subr.mxu0 0.0
  %1458 = vmatpush1.msra.mxu0 0.0
  %1459 = vmatprep.subr.mxu0 0.0
  %1460 = vmatpush1.msra.mxu0 0.0
  %1461 = vmatprep.subr.mxu0 0.0
  %1462 = vmatpush1.msra.mxu0 0.0
  %1463 = vmatprep.subr.mxu0 0.0
  %1464 = vmatpush1.msra.mxu0 0.0
  %1465 = vmatprep.subr.mxu0 0.0
  %1466 = vmatpush1.msra.mxu0 0.0
  %1467 = vmatprep.subr.mxu0 0.0
  %1468 = vmatpush1.msra.mxu0 0.0
  %1469 = vmatprep.subr.mxu0 0.0
  %1470 = vmatpush1.msra.mxu0 0.0
  %1471 = vmatprep.subr.mxu0 0.0
  %1472 = vmatpush1.msra.mxu0 0.0
  %1473 = vmatprep.mubr.f32.mxu0 0.0
  %1474 = vmatmul.mubr.f32.gmra.mrb[0].mxu0 %v1404
  %v1475 = vpop.f32.mrb[0].mxu0
  %v1476 = vadd.f32 0.0, %v1475
  %v1477 = vpop.f32.mrb[0].mxu0
  %1478 = vmatprep.mubr.f32.mxu0 0.0
  %1479 = vmatmul.mubr.f32.gmra.mrb[0].mxu0 %v1407
  %v1480 = vpop.f32.mrb[0].mxu0
  %v1481 = vadd.f32 0.0, %v1480
  %v1482 = vpop.f32.mrb[0].mxu0
  %1483 = vdwg.mxu0
  %1486 = vrot.lane.b32.xlu0 %v1476, 16
  %v1487 = vpop.permute.xlu0 %1486
  %1488 = vrot.lane.b32.xlu0 %v1481, 16
  %v1489 = vpop.permute.xlu0 %1488
  %v1492 = vsel %vm178, %v1276, %v1487
  %v1493 = vsel %vm178, %v1281, %v1489
  %v1494 = vld [vmem:[%s4 + $0xb] sm:$0x1]
  %v1495 = vlaneseq
  %v1496 = vshrl.u32 %v1495, 7
  %v1497 = vsub.s32 0, %v1496
  %v1498 = vrot.slane %v1494, %v1497
  %v1500 = vsel %vm26, %v1492, 0
  %v1503 = vsel %vm26, %v1493, 0
  %1505 = vmatprep.subr.mxu0 0.0
  %1506 = vmatpush1.msra.mxu0 %v983
  %1507 = vmatprep.subr.mxu0 0.0
  %1508 = vmatpush1.msra.mxu0 %v984
  %1509 = vmatprep.subr.mxu0 0.0
  %1510 = vmatpush1.msra.mxu0 %v985
  %1511 = vmatprep.subr.mxu0 0.0
  %1512 = vmatpush1.msra.mxu0 %v986
  %1513 = vmatprep.subr.mxu0 0.0
  %1514 = vmatpush1.msra.mxu0 0.0
  %1515 = vmatprep.subr.mxu0 0.0
  %1516 = vmatpush1.msra.mxu0 0.0
  %1517 = vmatprep.subr.mxu0 0.0
  %1518 = vmatpush1.msra.mxu0 0.0
  %1519 = vmatprep.subr.mxu0 0.0
  %1520 = vmatpush1.msra.mxu0 0.0
  %1521 = vmatprep.subr.mxu0 0.0
  %1522 = vmatpush1.msra.mxu0 0.0
  %1523 = vmatprep.subr.mxu0 0.0
  %1524 = vmatpush1.msra.mxu0 0.0
  %1525 = vmatprep.subr.mxu0 0.0
  %1526 = vmatpush1.msra.mxu0 0.0
  %1527 = vmatprep.subr.mxu0 0.0
  %1528 = vmatpush1.msra.mxu0 0.0
  %1529 = vmatprep.subr.mxu0 0.0
  %1530 = vmatpush1.msra.mxu0 0.0
  %1531 = vmatprep.subr.mxu0 0.0
  %1532 = vmatpush1.msra.mxu0 0.0
  %1533 = vmatprep.subr.mxu0 0.0
  %1534 = vmatpush1.msra.mxu0 0.0
  %1535 = vmatprep.subr.mxu0 0.0
  %1536 = vmatpush1.msra.mxu0 0.0
  %1537 = vmatprep.subr.mxu0 0.0
  %1538 = vmatpush1.msra.mxu0 0.0
  %1539 = vmatprep.subr.mxu0 0.0
  %1540 = vmatpush1.msra.mxu0 0.0
  %1541 = vmatprep.subr.mxu0 0.0
  %1542 = vmatpush1.msra.mxu0 0.0
  %1543 = vmatprep.subr.mxu0 0.0
  %1544 = vmatpush1.msra.mxu0 0.0
  %1545 = vmatprep.subr.mxu0 0.0
  %1546 = vmatpush1.msra.mxu0 0.0
  %1547 = vmatprep.subr.mxu0 0.0
  %1548 = vmatpush1.msra.mxu0 0.0
  %1549 = vmatprep.subr.mxu0 0.0
  %1550 = vmatpush1.msra.mxu0 0.0
  %1551 = vmatprep.subr.mxu0 0.0
  %1552 = vmatpush1.msra.mxu0 0.0
  %1553 = vmatprep.subr.mxu0 0.0
  %1554 = vmatpush1.msra.mxu0 0.0
  %1555 = vmatprep.subr.mxu0 0.0
  %1556 = vmatpush1.msra.mxu0 0.0
  %1557 = vmatprep.subr.mxu0 0.0
  %1558 = vmatpush1.msra.mxu0 0.0
  %1559 = vmatprep.subr.mxu0 0.0
  %1560 = vmatpush1.msra.mxu0 0.0
  %1561 = vmatprep.subr.mxu0 0.0
  %1562 = vmatpush1.msra.mxu0 0.0
  %1563 = vmatprep.subr.mxu0 0.0
  %1564 = vmatpush1.msra.mxu0 0.0
  %1565 = vmatprep.subr.mxu0 0.0
  %1566 = vmatpush1.msra.mxu0 0.0
  %1567 = vmatprep.subr.mxu0 0.0
  %1568 = vmatpush1.msra.mxu0 0.0
  %1569 = vmatprep.mubr.f32.mxu0 0.0
  %1570 = vmatmul.mubr.f32.gmra.mrb[0].mxu0 %v1500
  %v1571 = vpop.f32.mrb[0].mxu0
  %v1572 = vadd.f32 %v1498, %v1571
  %v1573 = vpop.f32.mrb[0].mxu0
  %1574 = vmatprep.mubr.f32.mxu0 0.0
  %1575 = vmatmul.mubr.f32.gmra.mrb[0].mxu0 %v1503
  %v1576 = vpop.f32.mrb[0].mxu0
  %v1577 = vadd.f32 %v1498, %v1576
  %v1578 = vpop.f32.mrb[0].mxu0
  %1579 = vdwg.mxu0
  %v1580 = vadd.f32 %v976, %v1572
  %v1581 = vadd.f32 %v977, %v1577
  %v1582 = vld [vmem:[%s4 + $0xc] sm:$0x1]
  %v1583 = vld [vmem:[%s4 + $0xd] sm:$0x1]
  %v1584 = vsel %vm26, %v1580, 0.0
  %1585 = vadd.xlane.f32.xlu0 %v1584
  %v1586 = vpop.xlane.xlu0 %1585
  %v1587 = vsel %vm26, %v1581, 0.0
  %1588 = vadd.xlane.f32.xlu0 %v1587
  %v1589 = vpop.xlane.xlu0 %1588
  %v1590 = vmul.f32 %v1586, %v33
  %v1591 = vmul.f32 %v1589, %v33
  %v1592 = vsub.f32 %v1580, %v1590
  %v1593 = vsub.f32 %v1581, %v1591
  %v1594 = vmul.f32 %v1592, %v1592
  %v1595 = vmul.f32 %v1593, %v1593
  %v1596 = vsel %vm26, %v1594, 0.0
  %1597 = vadd.xlane.f32.xlu0 %v1596
  %v1598 = vpop.xlane.xlu0 %1597
  %v1599 = vsel %vm26, %v1595, 0.0
  %1600 = vadd.xlane.f32.xlu0 %v1599
  %v1601 = vpop.xlane.xlu0 %1600
  %v1602 = vmul.f32 %v1598, %v33
  %v1603 = vmul.f32 %v1601, %v33
  %v1604 = vadd.f32 %v1602, 1e-12
  %v1605 = vadd.f32 %v1603, 1e-12
  %v1606 = vrsqrt.pop %v1604
  %v1607 = vrsqrt.pop %v1605
  %v1608 = vmul.f32 %v1592, %v1606
  %v1609 = vmul.f32 %v1593, %v1607
  %v1610 = vlaneseq
  %v1611 = vshrl.u32 %v1610, 7
  %v1612 = vsub.s32 0, %v1611
  %v1613 = vrot.slane %v1582, %v1612
  %v1614 = vmul.f32 %v1608, %v1613
  %v1615 = vmul.f32 %v1609, %v1613
  %v1616 = vlaneseq
  %v1617 = vshrl.u32 %v1616, 7
  %v1618 = vsub.s32 0, %v1617
  %v1619 = vrot.slane %v1583, %v1618
  %v1620 = vadd.f32 %v1614, %v1619
  %v1621 = vadd.f32 %v1615, %v1619
  %v1622 = vld [vmem:[%s4 + $0xe] sm:$0x1]
  %v1623 = vlaneseq
  %v1624 = vshrl.u32 %v1623, 7
  %v1625 = vsub.s32 0, %v1624
  %v1626 = vrot.slane %v1622, %v1625
  %v1628 = vsel %vm26, %v1620, 0
  %v1631 = vsel %vm26, %v1621, 0
  %1633 = vmatprep.subr.mxu0 0.0
  %1634 = vmatpush1.msra.mxu0 %v987
  %1635 = vmatprep.subr.mxu0 0.0
  %1636 = vmatpush1.msra.mxu0 %v988
  %1637 = vmatprep.subr.mxu0 0.0
  %1638 = vmatpush1.msra.mxu0 %v989
  %1639 = vmatprep.subr.mxu0 0.0
  %1640 = vmatpush1.msra.mxu0 %v990
  %1641 = vmatprep.subr.mxu0 0.0
  %1642 = vmatpush1.msra.mxu0 0.0
  %1643 = vmatprep.subr.mxu0 0.0
  %1644 = vmatpush1.msra.mxu0 0.0
  %1645 = vmatprep.subr.mxu0 0.0
  %1646 = vmatpush1.msra.mxu0 0.0
  %1647 = vmatprep.subr.mxu0 0.0
  %1648 = vmatpush1.msra.mxu0 0.0
  %1649 = vmatprep.subr.mxu0 0.0
  %1650 = vmatpush1.msra.mxu0 0.0
  %1651 = vmatprep.subr.mxu0 0.0
  %1652 = vmatpush1.msra.mxu0 0.0
  %1653 = vmatprep.subr.mxu0 0.0
  %1654 = vmatpush1.msra.mxu0 0.0
  %1655 = vmatprep.subr.mxu0 0.0
  %1656 = vmatpush1.msra.mxu0 0.0
  %1657 = vmatprep.subr.mxu0 0.0
  %1658 = vmatpush1.msra.mxu0 0.0
  %1659 = vmatprep.subr.mxu0 0.0
  %1660 = vmatpush1.msra.mxu0 0.0
  %1661 = vmatprep.subr.mxu0 0.0
  %1662 = vmatpush1.msra.mxu0 0.0
  %1663 = vmatprep.subr.mxu0 0.0
  %1664 = vmatpush1.msra.mxu0 0.0
  %1665 = vmatprep.subr.mxu0 0.0
  %1666 = vmatpush1.msra.mxu0 0.0
  %1667 = vmatprep.subr.mxu0 0.0
  %1668 = vmatpush1.msra.mxu0 0.0
  %1669 = vmatprep.subr.mxu0 0.0
  %1670 = vmatpush1.msra.mxu0 0.0
  %1671 = vmatprep.subr.mxu0 0.0
  %1672 = vmatpush1.msra.mxu0 0.0
  %1673 = vmatprep.subr.mxu0 0.0
  %1674 = vmatpush1.msra.mxu0 0.0
  %1675 = vmatprep.subr.mxu0 0.0
  %1676 = vmatpush1.msra.mxu0 0.0
  %1677 = vmatprep.subr.mxu0 0.0
  %1678 = vmatpush1.msra.mxu0 0.0
  %1679 = vmatprep.subr.mxu0 0.0
  %1680 = vmatpush1.msra.mxu0 0.0
  %1681 = vmatprep.subr.mxu0 0.0
  %1682 = vmatpush1.msra.mxu0 0.0
  %1683 = vmatprep.subr.mxu0 0.0
  %1684 = vmatpush1.msra.mxu0 0.0
  %1685 = vmatprep.subr.mxu0 0.0
  %1686 = vmatpush1.msra.mxu0 0.0
  %1687 = vmatprep.subr.mxu0 0.0
  %1688 = vmatpush1.msra.mxu0 0.0
  %1689 = vmatprep.subr.mxu0 0.0
  %1690 = vmatpush1.msra.mxu0 0.0
  %1691 = vmatprep.subr.mxu0 0.0
  %1692 = vmatpush1.msra.mxu0 0.0
  %1693 = vmatprep.subr.mxu0 0.0
  %1694 = vmatpush1.msra.mxu0 0.0
  %1695 = vmatprep.subr.mxu0 0.0
  %1696 = vmatpush1.msra.mxu0 0.0
  %1697 = vmatprep.mubr.f32.mxu0 0.0
  %1698 = vmatmul.mubr.f32.gmra.mrb[0].mxu0 %v1628
  %v1699 = vpop.f32.mrb[0].mxu0
  %v1700 = vadd.f32 %v1626, %v1699
  %v1701 = vpop.f32.mrb[0].mxu0
  %1702 = vmatprep.mubr.f32.mxu0 0.0
  %1703 = vmatmul.mubr.f32.gmra.mrb[0].mxu0 %v1631
  %v1704 = vpop.f32.mrb[0].mxu0
  %v1705 = vadd.f32 %v1626, %v1704
  %v1706 = vpop.f32.mrb[0].mxu0
  %1707 = vdwg.mxu0
  %v1708 = vmul.f32 %v1700, 0.5
  %v1709 = vmul.f32 %v1705, 0.5
  %v1710 = vmul.f32 %v1700, 0.70710677
  %v1711 = vmul.f32 %v1705, 0.70710677
  %vm1712 = vcmp.lt.f32.partialorder %v1710, 0.0
  %vm1713 = vcmp.lt.f32.partialorder %v1711, 0.0
  %v1714 = vsel %vm1712, -1.0, 1.0
  %v1715 = vsel %vm1713, -1.0, 1.0
  %v1716 = vand.u32 2147483647, %v1710
  %v1717 = vand.u32 2147483647, %v1711
  %v1718 = vmul.f32 %v1716, 0.3275911
  %v1719 = vmul.f32 %v1717, 0.3275911
  %v1720 = vadd.f32 %v1718, 1.0
  %v1721 = vadd.f32 %v1719, 1.0
  %v1722 = vrcp.pop %v1720
  %v1723 = vmul.f32 1.0, %v1722
  %v1724 = vrcp.pop %v1721
  %v1725 = vmul.f32 1.0, %v1724
  %v1726 = vmul.f32 %v1723, 1.0614054
  %v1727 = vmul.f32 %v1725, 1.0614054
  %v1728 = vadd.f32 %v1726, -1.4531521
  %v1729 = vadd.f32 %v1727, -1.4531521
  %v1730 = vmul.f32 %v1728, %v1723
  %v1731 = vmul.f32 %v1729, %v1725
  %v1732 = vadd.f32 %v1730, 1.4214138
  %v1733 = vadd.f32 %v1731, 1.4214138
  %v1734 = vmul.f32 %v1732, %v1723
  %v1735 = vmul.f32 %v1733, %v1725
  %v1736 = vadd.f32 %v1734, -0.28449672
  %v1737 = vadd.f32 %v1735, -0.28449672
  %v1738 = vmul.f32 %v1736, %v1723
  %v1739 = vmul.f32 %v1737, %v1725
  %v1740 = vadd.f32 %v1738, 0.2548296
  %v1741 = vadd.f32 %v1739, 0.2548296
  %v1742 = vmul.f32 %v1740, %v1723
  %v1743 = vmul.f32 %v1741, %v1725
  %v1744 = vsub.f32 0.0, %v1716
  %v1745 = vsub.f32 0.0, %v1717
  %v1746 = vmul.f32 %v1744, %v1716
  %v1747 = vmul.f32 %v1745, %v1717
  %v1748 = vmul.f32 %v1746, 1.442695
  %v1749 = vpow.pop %v1748
  %v1750 = vmul.f32 %v1747, 1.442695
  %v1751 = vpow.pop %v1750
  %v1752 = vmul.f32 %v1742, %v1749
  %v1753 = vmul.f32 %v1743, %v1751
  %v1754 = vsub.f32 1.0, %v1752
  %v1755 = vsub.f32 1.0, %v1753
  %v1756 = vmul.f32 %v1714, %v1754
  %v1757 = vmul.f32 %v1715, %v1755
  %v1758 = vadd.f32 %v1756, 1.0
  %v1759 = vadd.f32 %v1757, 1.0
  %v1760 = vmul.f32 %v1708, %v1758
  %v1761 = vmul.f32 %v1709, %v1759
  %v1762 = vld [vmem:[%s4 + $0xf] sm:$0x1]
  %v1763 = vlaneseq
  %v1764 = vshrl.u32 %v1763, 7
  %v1765 = vsub.s32 0, %v1764
  %v1766 = vrot.slane %v1762, %v1765
  %v1768 = vsel %vm854, %v1760, 0
  %v1771 = vsel %vm854, %v1761, 0
  %1773 = vmatprep.subr.mxu0 0.0
  %1774 = vmatpush1.msra.mxu0 %v992
  %1775 = vmatprep.subr.mxu0 0.0
  %1776 = vmatpush1.msra.mxu0 %v993
  %1777 = vmatprep.subr.mxu0 0.0
  %1778 = vmatpush1.msra.mxu0 %v994
  %1779 = vmatprep.subr.mxu0 0.0
  %1780 = vmatpush1.msra.mxu0 %v995
  %1781 = vmatprep.subr.mxu0 0.0
  %1782 = vmatpush1.msra.mxu0 %v996
  %1783 = vmatprep.subr.mxu0 0.0
  %1784 = vmatpush1.msra.mxu0 %v997
  %1785 = vmatprep.subr.mxu0 0.0
  %1786 = vmatpush1.msra.mxu0 %v998
  %1787 = vmatprep.subr.mxu0 0.0
  %1788 = vmatpush1.msra.mxu0 %v999
  %1789 = vmatprep.subr.mxu0 0.0
  %1790 = vmatpush1.msra.mxu0 0.0
  %1791 = vmatprep.subr.mxu0 0.0
  %1792 = vmatpush1.msra.mxu0 0.0
  %1793 = vmatprep.subr.mxu0 0.0
  %1794 = vmatpush1.msra.mxu0 0.0
  %1795 = vmatprep.subr.mxu0 0.0
  %1796 = vmatpush1.msra.mxu0 0.0
  %1797 = vmatprep.subr.mxu0 0.0
  %1798 = vmatpush1.msra.mxu0 0.0
  %1799 = vmatprep.subr.mxu0 0.0
  %1800 = vmatpush1.msra.mxu0 0.0
  %1801 = vmatprep.subr.mxu0 0.0
  %1802 = vmatpush1.msra.mxu0 0.0
  %1803 = vmatprep.subr.mxu0 0.0
  %1804 = vmatpush1.msra.mxu0 0.0
  %1805 = vmatprep.subr.mxu0 0.0
  %1806 = vmatpush1.msra.mxu0 0.0
  %1807 = vmatprep.subr.mxu0 0.0
  %1808 = vmatpush1.msra.mxu0 0.0
  %1809 = vmatprep.subr.mxu0 0.0
  %1810 = vmatpush1.msra.mxu0 0.0
  %1811 = vmatprep.subr.mxu0 0.0
  %1812 = vmatpush1.msra.mxu0 0.0
  %1813 = vmatprep.subr.mxu0 0.0
  %1814 = vmatpush1.msra.mxu0 0.0
  %1815 = vmatprep.subr.mxu0 0.0
  %1816 = vmatpush1.msra.mxu0 0.0
  %1817 = vmatprep.subr.mxu0 0.0
  %1818 = vmatpush1.msra.mxu0 0.0
  %1819 = vmatprep.subr.mxu0 0.0
  %1820 = vmatpush1.msra.mxu0 0.0
  %1821 = vmatprep.subr.mxu0 0.0
  %1822 = vmatpush1.msra.mxu0 0.0
  %1823 = vmatprep.subr.mxu0 0.0
  %1824 = vmatpush1.msra.mxu0 0.0
  %1825 = vmatprep.subr.mxu0 0.0
  %1826 = vmatpush1.msra.mxu0 0.0
  %1827 = vmatprep.subr.mxu0 0.0
  %1828 = vmatpush1.msra.mxu0 0.0
  %1829 = vmatprep.subr.mxu0 0.0
  %1830 = vmatpush1.msra.mxu0 0.0
  %1831 = vmatprep.subr.mxu0 0.0
  %1832 = vmatpush1.msra.mxu0 0.0
  %1833 = vmatprep.subr.mxu0 0.0
  %1834 = vmatpush1.msra.mxu0 0.0
  %1835 = vmatprep.subr.mxu0 0.0
  %1836 = vmatpush1.msra.mxu0 0.0
  %1837 = vmatprep.mubr.f32.mxu0 0.0
  %1838 = vmatmul.mubr.f32.gmra.mrb[0].mxu0 %v1768
  %v1839 = vpop.f32.mrb[0].mxu0
  %v1840 = vadd.f32 %v1766, %v1839
  %v1841 = vpop.f32.mrb[0].mxu0
  %1842 = vmatprep.mubr.f32.mxu0 0.0
  %1843 = vmatmul.mubr.f32.gmra.mrb[0].mxu0 %v1771
  %v1844 = vpop.f32.mrb[0].mxu0
  %v1845 = vadd.f32 %v1766, %v1844
  %v1846 = vpop.f32.mrb[0].mxu0
  %1847 = vdwg.mxu0
  %v1848 = vadd.f32 %v1620, %v1840
  %v1849 = vadd.f32 %v1621, %v1845
  %v1850 = vld [vmem:[%s4 + $0x10] sm:$0x1]
  %v1851 = vld [vmem:[%s4 + $0x11] sm:$0x1]
  %v1852 = vsel %vm26, %v1848, 0.0
  %1853 = vadd.xlane.f32.xlu0 %v1852
  %v1854 = vpop.xlane.xlu0 %1853
  %v1855 = vsel %vm26, %v1849, 0.0
  %1856 = vadd.xlane.f32.xlu0 %v1855
  %v1857 = vpop.xlane.xlu0 %1856
  %v1858 = vmul.f32 %v1854, %v33
  %v1859 = vmul.f32 %v1857, %v33
  %v1860 = vsub.f32 %v1848, %v1858
  %v1861 = vsub.f32 %v1849, %v1859
  %v1862 = vmul.f32 %v1860, %v1860
  %v1863 = vmul.f32 %v1861, %v1861
  %v1864 = vsel %vm26, %v1862, 0.0
  %1865 = vadd.xlane.f32.xlu0 %v1864
  %v1866 = vpop.xlane.xlu0 %1865
  %v1867 = vsel %vm26, %v1863, 0.0
  %1868 = vadd.xlane.f32.xlu0 %v1867
  %v1869 = vpop.xlane.xlu0 %1868
  %v1870 = vmul.f32 %v1866, %v33
  %v1871 = vmul.f32 %v1869, %v33
  %v1872 = vadd.f32 %v1870, 1e-12
  %v1873 = vadd.f32 %v1871, 1e-12
  %v1874 = vrsqrt.pop %v1872
  %v1875 = vrsqrt.pop %v1873
  %v1876 = vmul.f32 %v1860, %v1874
  %v1877 = vmul.f32 %v1861, %v1875
  %v1878 = vlaneseq
  %v1879 = vshrl.u32 %v1878, 7
  %v1880 = vsub.s32 0, %v1879
  %v1881 = vrot.slane %v1850, %v1880
  %v1882 = vmul.f32 %v1876, %v1881
  %v1883 = vmul.f32 %v1877, %v1881
  %v1884 = vlaneseq
  %v1885 = vshrl.u32 %v1884, 7
  %v1886 = vsub.s32 0, %v1885
  %v1887 = vrot.slane %v1851, %v1886
  %v1888 = vadd.f32 %v1882, %v1887
  %v1889 = vadd.f32 %v1883, %v1887
  %s1890 = scalar_lea.vmem %s2, 192
  %v1891 = vld [vmem:[%s1890] sm:$0xff]
  %v1892 = vld [vmem:[%s1890 + $0x18] sm:$0xff]
  %v1893 = vld [vmem:[%s1890 + $0x30] sm:$0xff]
  %v1894 = vld [vmem:[%s1890 + $0x48] sm:$0xff]
  %v1895 = vld [vmem:[%s1890 + $0x8] sm:$0xff]
  %v1896 = vld [vmem:[%s1890 + $0x20] sm:$0xff]
  %v1897 = vld [vmem:[%s1890 + $0x38] sm:$0xff]
  %v1898 = vld [vmem:[%s1890 + $0x50] sm:$0xff]
  %v1899 = vld [vmem:[%s4 + $0x12] sm:$0x1]
  %v1900 = vlaneseq
  %v1901 = vshrl.u32 %v1900, 7
  %v1902 = vsub.s32 0, %v1901
  %v1903 = vrot.slane %v1899, %v1902
  %v1905 = vsel %vm26, %v1888, 0
  %v1908 = vsel %vm26, %v1889, 0
  %1910 = vmatprep.subr.mxu0 0.0
  %1911 = vmatpush1.msra.mxu0 %v1891
  %1912 = vmatprep.subr.mxu0 0.0
  %1913 = vmatpush1.msra.mxu0 %v1892
  %1914 = vmatprep.subr.mxu0 0.0
  %1915 = vmatpush1.msra.mxu0 %v1893
  %1916 = vmatprep.subr.mxu0 0.0
  %1917 = vmatpush1.msra.mxu0 %v1894
  %1918 = vmatprep.subr.mxu0 0.0
  %1919 = vmatpush1.msra.mxu0 0.0
  %1920 = vmatprep.subr.mxu0 0.0
  %1921 = vmatpush1.msra.mxu0 0.0
  %1922 = vmatprep.subr.mxu0 0.0
  %1923 = vmatpush1.msra.mxu0 0.0
  %1924 = vmatprep.subr.mxu0 0.0
  %1925 = vmatpush1.msra.mxu0 0.0
  %1926 = vmatprep.subr.mxu0 0.0
  %1927 = vmatpush1.msra.mxu0 0.0
  %1928 = vmatprep.subr.mxu0 0.0
  %1929 = vmatpush1.msra.mxu0 0.0
  %1930 = vmatprep.subr.mxu0 0.0
  %1931 = vmatpush1.msra.mxu0 0.0
  %1932 = vmatprep.subr.mxu0 0.0
  %1933 = vmatpush1.msra.mxu0 0.0
  %1934 = vmatprep.subr.mxu0 0.0
  %1935 = vmatpush1.msra.mxu0 0.0
  %1936 = vmatprep.subr.mxu0 0.0
  %1937 = vmatpush1.msra.mxu0 0.0
  %1938 = vmatprep.subr.mxu0 0.0
  %1939 = vmatpush1.msra.mxu0 0.0
  %1940 = vmatprep.subr.mxu0 0.0
  %1941 = vmatpush1.msra.mxu0 0.0
  %1942 = vmatprep.subr.mxu0 0.0
  %1943 = vmatpush1.msra.mxu0 0.0
  %1944 = vmatprep.subr.mxu0 0.0
  %1945 = vmatpush1.msra.mxu0 0.0
  %1946 = vmatprep.subr.mxu0 0.0
  %1947 = vmatpush1.msra.mxu0 0.0
  %1948 = vmatprep.subr.mxu0 0.0
  %1949 = vmatpush1.msra.mxu0 0.0
  %1950 = vmatprep.subr.mxu0 0.0
  %1951 = vmatpush1.msra.mxu0 0.0
  %1952 = vmatprep.subr.mxu0 0.0
  %1953 = vmatpush1.msra.mxu0 0.0
  %1954 = vmatprep.subr.mxu0 0.0
  %1955 = vmatpush1.msra.mxu0 0.0
  %1956 = vmatprep.subr.mxu0 0.0
  %1957 = vmatpush1.msra.mxu0 0.0
  %1958 = vmatprep.subr.mxu0 0.0
  %1959 = vmatpush1.msra.mxu0 0.0
  %1960 = vmatprep.subr.mxu0 0.0
  %1961 = vmatpush1.msra.mxu0 0.0
  %1962 = vmatprep.subr.mxu0 0.0
  %1963 = vmatpush1.msra.mxu0 0.0
  %1964 = vmatprep.subr.mxu0 0.0
  %1965 = vmatpush1.msra.mxu0 0.0
  %1966 = vmatprep.subr.mxu0 0.0
  %1967 = vmatpush1.msra.mxu0 0.0
  %1968 = vmatprep.subr.mxu0 0.0
  %1969 = vmatpush1.msra.mxu0 0.0
  %1970 = vmatprep.subr.mxu0 0.0
  %1971 = vmatpush1.msra.mxu0 0.0
  %1972 = vmatprep.subr.mxu0 0.0
  %1973 = vmatpush1.msra.mxu0 0.0
  %1974 = vmatprep.mubr.f32.mxu0 0.0
  %1975 = vmatmul.mubr.f32.gmra.mrb[0].mxu0 %v1905
  %v1976 = vpop.f32.mrb[0].mxu0
  %v1977 = vadd.f32 %v1903, %v1976
  %v1978 = vpop.f32.mrb[0].mxu0
  %1979 = vmatprep.mubr.f32.mxu0 0.0
  %1980 = vmatmul.mubr.f32.gmra.mrb[0].mxu0 %v1908
  %v1981 = vpop.f32.mrb[0].mxu0
  %v1982 = vadd.f32 %v1903, %v1981
  %v1983 = vpop.f32.mrb[0].mxu0
  %1984 = vdwg.mxu0
  %v1985 = vtanh.pop %v1977
  %v1986 = vtanh.pop %v1982
  %v1987 = vld [vmem:[%s4 + $0x13] sm:$0x1]
  %v1988 = vlaneseq
  %v1989 = vshrl.u32 %v1988, 7
  %v1990 = vsub.s32 0, %v1989
  %v1991 = vrot.slane %v1987, %v1990
  %v1993 = vsel %vm26, %v1985, 0
  %v1996 = vsel %vm26, %v1986, 0
  %1998 = vmatprep.subr.mxu0 0.0
  %1999 = vmatpush1.msra.mxu0 %v1895
  %2000 = vmatprep.subr.mxu0 0.0
  %2001 = vmatpush1.msra.mxu0 %v1896
  %2002 = vmatprep.subr.mxu0 0.0
  %2003 = vmatpush1.msra.mxu0 %v1897
  %2004 = vmatprep.subr.mxu0 0.0
  %2005 = vmatpush1.msra.mxu0 %v1898
  %2006 = vmatprep.subr.mxu0 0.0
  %2007 = vmatpush1.msra.mxu0 0.0
  %2008 = vmatprep.subr.mxu0 0.0
  %2009 = vmatpush1.msra.mxu0 0.0
  %2010 = vmatprep.subr.mxu0 0.0
  %2011 = vmatpush1.msra.mxu0 0.0
  %2012 = vmatprep.subr.mxu0 0.0
  %2013 = vmatpush1.msra.mxu0 0.0
  %2014 = vmatprep.subr.mxu0 0.0
  %2015 = vmatpush1.msra.mxu0 0.0
  %2016 = vmatprep.subr.mxu0 0.0
  %2017 = vmatpush1.msra.mxu0 0.0
  %2018 = vmatprep.subr.mxu0 0.0
  %2019 = vmatpush1.msra.mxu0 0.0
  %2020 = vmatprep.subr.mxu0 0.0
  %2021 = vmatpush1.msra.mxu0 0.0
  %2022 = vmatprep.subr.mxu0 0.0
  %2023 = vmatpush1.msra.mxu0 0.0
  %2024 = vmatprep.subr.mxu0 0.0
  %2025 = vmatpush1.msra.mxu0 0.0
  %2026 = vmatprep.subr.mxu0 0.0
  %2027 = vmatpush1.msra.mxu0 0.0
  %2028 = vmatprep.subr.mxu0 0.0
  %2029 = vmatpush1.msra.mxu0 0.0
  %2030 = vmatprep.subr.mxu0 0.0
  %2031 = vmatpush1.msra.mxu0 0.0
  %2032 = vmatprep.subr.mxu0 0.0
  %2033 = vmatpush1.msra.mxu0 0.0
  %2034 = vmatprep.subr.mxu0 0.0
  %2035 = vmatpush1.msra.mxu0 0.0
  %2036 = vmatprep.subr.mxu0 0.0
  %2037 = vmatpush1.msra.mxu0 0.0
  %2038 = vmatprep.subr.mxu0 0.0
  %2039 = vmatpush1.msra.mxu0 0.0
  %2040 = vmatprep.subr.mxu0 0.0
  %2041 = vmatpush1.msra.mxu0 0.0
  %2042 = vmatprep.subr.mxu0 0.0
  %2043 = vmatpush1.msra.mxu0 0.0
  %2044 = vmatprep.subr.mxu0 0.0
  %2045 = vmatpush1.msra.mxu0 0.0
  %2046 = vmatprep.subr.mxu0 0.0
  %2047 = vmatpush1.msra.mxu0 0.0
  %2048 = vmatprep.subr.mxu0 0.0
  %2049 = vmatpush1.msra.mxu0 0.0
  %2050 = vmatprep.subr.mxu0 0.0
  %2051 = vmatpush1.msra.mxu0 0.0
  %2052 = vmatprep.subr.mxu0 0.0
  %2053 = vmatpush1.msra.mxu0 0.0
  %2054 = vmatprep.subr.mxu0 0.0
  %2055 = vmatpush1.msra.mxu0 0.0
  %2056 = vmatprep.subr.mxu0 0.0
  %2057 = vmatpush1.msra.mxu0 0.0
  %2058 = vmatprep.subr.mxu0 0.0
  %2059 = vmatpush1.msra.mxu0 0.0
  %2060 = vmatprep.subr.mxu0 0.0
  %2061 = vmatpush1.msra.mxu0 0.0
  %2062 = vmatprep.mubr.f32.mxu0 0.0
  %2063 = vmatmul.mubr.f32.gmra.mrb[0].mxu0 %v1993
  %v2064 = vpop.f32.mrb[0].mxu0
  %v2065 = vadd.f32 %v1991, %v2064
  %v2066 = vpop.f32.mrb[0].mxu0
  %2067 = vmatprep.mubr.f32.mxu0 0.0
  %2068 = vmatmul.mubr.f32.gmra.mrb[0].mxu0 %v1996
  %v2069 = vpop.f32.mrb[0].mxu0
  %v2070 = vadd.f32 %v1991, %v2069
  %v2071 = vpop.f32.mrb[0].mxu0
  %2072 = vdwg.mxu0
  %v2073 = vxor.u32 %v2065, 2147483648
  %v2074 = vxor.u32 %v2070, 2147483648
  %v2075 = vmul.f32 %v2073, 1.442695
  %v2076 = vpow.pop %v2075
  %v2077 = vmul.f32 %v2074, 1.442695
  %v2078 = vpow.pop %v2077
  %v2079 = vadd.f32 %v2076, 1.0
  %v2080 = vadd.f32 %v2078, 1.0
  %v2081 = vrcp.pop %v2079
  %v2082 = vmul.f32 1.0, %v2081
  %v2083 = vrcp.pop %v2080
  %v2084 = vmul.f32 1.0, %v2083
  %2085 = vst [vmem:[%s5] sm:$0xff] %v2082
  %2086 = vst [vmem:[%s5 + $0x8] sm:$0xff] %v2084
  // Predicated region
  $region22: #{n2sm2_forward.1} parent=0 // pred_check
    _
  $region23: #{n2sm2_forward.1} parent=0 // pred_check_branch
    %2088 = sbr.rel (0) target = $region25
  $region24: #{n2sm2_forward.1} parent=0 // pred_region
    _
  $region25: #{n2sm2_forward.1} parent=0 // pred_fallthru
    _
  // Predicated region
  $region26: #{n2sm2_forward.1} parent=0 // pred_check
    _
  $region27: #{n2sm2_forward.1} parent=0 // pred_check_branch
    %2090 = sbr.rel (0) target = $region29
  $region28: #{n2sm2_forward.1} parent=0 // pred_region
    _
  $region29: #{n2sm2_forward.1} parent=0 // pred_fallthru
    _

</llo_original>
